<compile_context>
chip_gen: v7x
topology: tpu7x:2x2x1
jax: 0.10.0
libtpu: 0.0.40
codegen_flags: <defaults>
</compile_context>

<pallas_src>
from functools import partial

import jax
import jax.numpy as jnp
import numpy as np
from jax.experimental import pallas as pl
from jax.experimental.pallas import tpu as pltpu


# ----------------------------------------------------------------------------- kernel body


def _cheb_stacked(L, x, w_flat, b, K, compute_dtype):
    """One ChebConv with the K per-order matmuls collapsed into one deep matmul.

    L:       [N, N]        (compute_dtype, e.g. bf16)
    x:       [N, Fin]      f32
    w_flat:  [K*Fin, Fout] f32  (flattened [K, Fin, Fout], done in the wrapper)
    b:       [1, Fout]     f32
    """
    ts = [x]
    if K > 1:
        t1 = jnp.dot(L, x.astype(compute_dtype), preferred_element_type=jnp.float32)
        ts.append(t1)
        for _ in range(2, K):
            tk = 2.0 * jnp.dot(L, ts[-1].astype(compute_dtype),
                               preferred_element_type=jnp.float32) - ts[-2]
            ts.append(tk)
    t_stack = ts[0] if K == 1 else jnp.concatenate(ts, axis=-1)   # [N, K*Fin]
    return jnp.dot(t_stack, w_flat, preferred_element_type=jnp.float32) + b


def _graph_resnet_kernel(*refs, depth, K, K_mix, compute_dtype):
    """Fused Graph_resnet forward.

    refs layout:
      [0] L_hat  [N, N]              (compute_dtype)
      [1] x      [N, F]              f32
      then per layer i in range(depth):
          w_kipf_flat [K*Fin, nh], b_kipf [1, nh], w_skip [Fin, nh], b_skip [1, nh]
      [-3] w_mix_flat [K_mix*(nh+F), C_pad]
      [-2] b_mix      [1, C_pad]
      [-1] o_ref      [N, C_pad]     (output)
    """
    L_ref, x_ref = refs[0], refs[1]
    layer_refs = refs[2:2 + 4 * depth]
    wmix_ref, bmix_ref = refs[2 + 4 * depth], refs[3 + 4 * depth]
    o_ref = refs[4 + 4 * depth]

    L = L_ref[...]          # resident once for the whole network
    x_in = x_ref[...]       # kept for the in/out skip connection
    x = x_in

    for i in range(depth):
        wk, bk, ws, bs = layer_refs[4 * i:4 * i + 4]
        # Kipfblock: ChebConv(K) -> ReLU  (dropout = identity in eval mode)
        h = _cheb_stacked(L, x, wk[...], bk[...], K, compute_dtype)
        h = jnp.maximum(h, 0.0)
        # skip projection: ChebConv(K=1) == x @ W0 + b
        s = jnp.dot(x, ws[...], preferred_element_type=jnp.float32) + bs[...]
        x = h + s

    z = jnp.concatenate([x, x_in], axis=-1)                 # in/out skip concat
    out = _cheb_stacked(L, z, wmix_ref[...], bmix_ref[...], K_mix, compute_dtype)
    o_ref[...] = out.astype(o_ref.dtype)


# ----------------------------------------------------------------------------- wrapper


def _round_up(v, m):
    return (v + m - 1) // m * m


def graph_resnet_forward(x, L_hat, params, *, compute_dtype=jnp.bfloat16):
    """x: [N, num_features] -> [N, num_classes]. Single fused pallas_call."""
    N, F = x.shape
    depth = len(params["blocks"])
    K = params["blocks"][0]["w_kipf"].shape[0]
    K_mix, f_mix, C = params["w_mix"].shape
    C_pad = _round_up(C, 128)           # lane-dense output stores

    operands = [L_hat.astype(compute_dtype), x.astype(jnp.float32)]
    for blk in params["blocks"]:
        wk = blk["w_kipf"]                                   # [K, Fin, nh]
        Kk, fin, nh = wk.shape
        operands.append(wk.reshape(Kk * fin, nh))            # flatten in wrapper (free)
        operands.append(blk["b_kipf"].reshape(1, -1))
        operands.append(blk["w_skip"])                       # [Fin, nh]
        operands.append(blk["b_skip"].reshape(1, -1))

    wmix_flat = params["w_mix"].reshape(K_mix * f_mix, C)
    wmix_pad = jnp.pad(wmix_flat, ((0, 0), (0, C_pad - C)))
    bmix_pad = jnp.pad(params["b_mix"].reshape(1, -1), ((0, 0), (0, C_pad - C)))
    operands += [wmix_pad, bmix_pad]

    kernel = partial(_graph_resnet_kernel, depth=depth, K=K, K_mix=K_mix,
                     compute_dtype=compute_dtype)
    vmem = pl.BlockSpec(memory_space=pltpu.MemorySpace.VMEM)

    out = pl.pallas_call(
        kernel,
        out_shape=jax.ShapeDtypeStruct((N, C_pad), jnp.float32),
        in_specs=[vmem] * len(operands),
        out_specs=vmem,
        compiler_params=pltpu.CompilerParams(
            # explicit scoped-VMEM limit: above the 32 MiB default, below v7x's 64 MiB.
            vmem_limit_bytes=48 * 1024 * 1024),
    )(*operands)
    return out[:, :C]


# ----------------------------------------------------------------------------- setup helpers


def build_scaled_laplacian(edge_index, num_nodes):
    """Dense L_hat = -D^{-1/2} A D^{-1/2} (sym normalization, lambda_max=2, zero diag).

    Uses scatter-ADD (matches torch_geometric summing duplicate edge weights).
    TODO(synk): directed edge_index would diverge from torch_geometric's sym normalization.
    """
    src, dst = edge_index[0], edge_index[1]
    A = jnp.zeros((num_nodes, num_nodes), jnp.float32).at[dst, src].add(1.0)
    deg = A.sum(axis=1)
    d_inv_sqrt = jnp.where(deg > 0, 1.0 / jnp.sqrt(deg), 0.0)
    return -(d_inv_sqrt[:, None] * A * d_inv_sqrt[None, :])


def init_params(key, num_features, num_classes, nh, K, K_mix, depth):
    blocks = []
    fin = num_features
    for _ in range(depth):
        key, kk, kbk, ks, kbs = jax.random.split(key, 5)
        blocks.append({
            "w_kipf": jax.random.normal(kk, (K, fin, nh), jnp.float32)
                      / jnp.sqrt(jnp.float32(K * fin)),
            "b_kipf": 0.01 * jax.random.normal(kbk, (nh,), jnp.float32),
            "w_skip": jax.random.normal(ks, (fin, nh), jnp.float32)
                      / jnp.sqrt(jnp.float32(fin)),
            "b_skip": 0.01 * jax.random.normal(kbs, (nh,), jnp.float32),
        })
        fin = nh
    key, km, kbm = jax.random.split(key, 3)
    f_mix = nh + num_features
    return {
        "blocks": blocks,
        "w_mix": jax.random.normal(km, (K_mix, f_mix, num_classes), jnp.float32)
                 / jnp.sqrt(jnp.float32(K_mix * f_mix)),
        "b_mix": 0.01 * jax.random.normal(kbm, (num_classes,), jnp.float32),
    }


# ----------------------------------------------------------------------------- pure-JAX reference


def _cheb_ref(L, x, W, b, K):
    hp = jax.lax.Precision.HIGHEST
    ts = [x]
    if K > 1:
        ts.append(jnp.dot(L, x, precision=hp))
        for _ in range(2, K):
            ts.append(2.0 * jnp.dot(L, ts[-1], precision=hp) - ts[-2])
    out = b.reshape(1, -1)
    for k in range(K):
        out = out + jnp.dot(ts[k], W[k], precision=hp)
    return out


def graph_resnet_ref(x, L, params):
    hp = jax.lax.Precision.HIGHEST
    x_in = x
    for blk in params["blocks"]:
        K = blk["w_kipf"].shape[0]
        h = jax.nn.relu(_cheb_ref(L, x, blk["w_kipf"], blk["b_kipf"], K))
        s = jnp.dot(x, blk["w_skip"], precision=hp) + blk["b_skip"].reshape(1, -1)
        x = h + s
    z = jnp.concatenate([x, x_in], axis=1)
    K_mix = params["w_mix"].shape[0]
    return _cheb_ref(L, z, params["w_mix"], params["b_mix"], K_mix)


# ----------------------------------------------------------------------------- demo


if __name__ == "__main__":
    # Small deterministic problem (shapes consistent with the module's constructor args).
    N = 16              # graph nodes
    num_features = 8
    num_classes = 4
    nh = 32             # hidden width (constructor arg; TPU-friendly choice)
    K = 6               # ChebConv order (module default)
    K_mix = 2           # mix-conv order (module default)
    depth = 3           # module default

    key = jax.random.PRNGKey(0)
    kx, kp = jax.random.split(key)

    # Undirected ring graph, edge_index shape [2, 2N].
    idx = jnp.arange(N, dtype=jnp.int32)
    src = jnp.concatenate([idx, (idx + 1) % N])
    dst = jnp.concatenate([(idx + 1) % N, idx])
    edge_index = jnp.stack([src, dst], axis=0)

    x = jax.random.normal(kx, (N, num_features), jnp.float32)
    L_hat = build_scaled_laplacian(edge_index, N)
    params = init_params(kp, num_features, num_classes, nh, K, K_mix, depth)

    fwd_bf16 = jax.jit(partial(graph_resnet_forward, compute_dtype=jnp.bfloat16))
    fwd_f32 = jax.jit(partial(graph_resnet_forward, compute_dtype=jnp.float32))

    out = fwd_bf16(x, L_hat, params)
    jax.block_until_ready(out)
    assert out.shape == (N, num_classes)

    # Validate against a pure-JAX f32 reference (checks bf16 error growth through the
    # chained Chebyshev recurrence, as requested in the review).
    ref = np.asarray(graph_resnet_ref(x, L_hat, params), np.float64)
    out_f32 = np.asarray(fwd_f32(x, L_hat, params), np.float64)
    out_bf16 = np.asarray(out, np.float64)

    def rel_err(a, b):
        return float(np.linalg.norm(a - b) / (np.linalg.norm(b) + 1e-12))

    assert rel_err(out_f32, ref) < 2e-2, f"f32 path rel err {rel_err(out_f32, ref)}"
    assert rel_err(out_bf16, ref) < 6e-2, f"bf16 path rel err {rel_err(out_bf16, ref)}"

    print("KERNEL_OK")
</pallas_src>

<mosaic_0001>
module attributes {stable_mosaic.version = 11 : i64} {
  func.func @_graph_resnet_kernel(%arg0: memref<16x16xbf16, #tpu.memory_space<vmem>>, %arg1: memref<16x8xf32, #tpu.memory_space<vmem>>, %arg2: memref<48x32xf32, #tpu.memory_space<vmem>>, %arg3: memref<1x32xf32, #tpu.memory_space<vmem>>, %arg4: memref<8x32xf32, #tpu.memory_space<vmem>>, %arg5: memref<1x32xf32, #tpu.memory_space<vmem>>, %arg6: memref<192x32xf32, #tpu.memory_space<vmem>>, %arg7: memref<1x32xf32, #tpu.memory_space<vmem>>, %arg8: memref<32x32xf32, #tpu.memory_space<vmem>>, %arg9: memref<1x32xf32, #tpu.memory_space<vmem>>, %arg10: memref<192x32xf32, #tpu.memory_space<vmem>>, %arg11: memref<1x32xf32, #tpu.memory_space<vmem>>, %arg12: memref<32x32xf32, #tpu.memory_space<vmem>>, %arg13: memref<1x32xf32, #tpu.memory_space<vmem>>, %arg14: memref<80x128xf32, #tpu.memory_space<vmem>>, %arg15: memref<1x128xf32, #tpu.memory_space<vmem>>, %arg16: memref<16x128xf32, #tpu.memory_space<vmem>>) attributes {dimension_semantics = [], scalar_prefetch = 0 : i64, scratch_operands = 0 : i64, tpu.core_type = #tpu.core_type<tc>} {
    %c0 = arith.constant 0 : index
    %c0_0 = arith.constant 0 : index
    %0 = vector.load %arg0[%c0, %c0_0] : memref<16x16xbf16, #tpu.memory_space<vmem>>, vector<16x16xbf16>
    %c0_1 = arith.constant 0 : index
    %c0_2 = arith.constant 0 : index
    %1 = vector.load %arg1[%c0_1, %c0_2] : memref<16x8xf32, #tpu.memory_space<vmem>>, vector<16x8xf32>
    %c0_3 = arith.constant 0 : index
    %c0_4 = arith.constant 0 : index
    %2 = vector.load %arg2[%c0_3, %c0_4] : memref<48x32xf32, #tpu.memory_space<vmem>>, vector<48x32xf32>
    %c0_5 = arith.constant 0 : index
    %c0_6 = arith.constant 0 : index
    %3 = vector.load %arg3[%c0_5, %c0_6] : memref<1x32xf32, #tpu.memory_space<vmem>>, vector<1x32xf32>
    %4 = arith.truncf %1 : vector<16x8xf32> to vector<16x8xbf16>
    %cst = arith.constant dense<0.000000e+00> : vector<16x8xf32>
    %5 = tpu.matmul %0, %4, %cst {dimension_numbers = #tpu.dot_dimension_numbers<[1], [0], [0], [1], [0, 0, 1, 1], [], []>} : vector<16x16xbf16>, vector<16x8xbf16>, vector<16x8xf32> -> vector<16x8xf32>
    %6 = arith.truncf %5 : vector<16x8xf32> to vector<16x8xbf16>
    %cst_7 = arith.constant dense<0.000000e+00> : vector<16x8xf32>
    %7 = tpu.matmul %0, %6, %cst_7 {dimension_numbers = #tpu.dot_dimension_numbers<[1], [0], [0], [1], [0, 0, 1, 1], [], []>} : vector<16x16xbf16>, vector<16x8xbf16>, vector<16x8xf32> -> vector<16x8xf32>
    %cst_8 = arith.constant 2.000000e+00 : f32
    %8 = vector.broadcast %cst_8 : f32 to vector<16x8xf32>
    %9 = arith.mulf %8, %7 : vector<16x8xf32>
    %10 = arith.subf %9, %1 : vector<16x8xf32>
    %11 = arith.truncf %10 : vector<16x8xf32> to vector<16x8xbf16>
    %cst_9 = arith.constant dense<0.000000e+00> : vector<16x8xf32>
    %12 = tpu.matmul %0, %11, %cst_9 {dimension_numbers = #tpu.dot_dimension_numbers<[1], [0], [0], [1], [0, 0, 1, 1], [], []>} : vector<16x16xbf16>, vector<16x8xbf16>, vector<16x8xf32> -> vector<16x8xf32>
    %cst_10 = arith.constant 2.000000e+00 : f32
    %13 = vector.broadcast %cst_10 : f32 to vector<16x8xf32>
    %14 = arith.mulf %13, %12 : vector<16x8xf32>
    %15 = arith.subf %14, %5 : vector<16x8xf32>
    %16 = arith.truncf %15 : vector<16x8xf32> to vector<16x8xbf16>
    %cst_11 = arith.constant dense<0.000000e+00> : vector<16x8xf32>
    %17 = tpu.matmul %0, %16, %cst_11 {dimension_numbers = #tpu.dot_dimension_numbers<[1], [0], [0], [1], [0, 0, 1, 1], [], []>} : vector<16x16xbf16>, vector<16x8xbf16>, vector<16x8xf32> -> vector<16x8xf32>
    %cst_12 = arith.constant 2.000000e+00 : f32
    %18 = vector.broadcast %cst_12 : f32 to vector<16x8xf32>
    %19 = arith.mulf %18, %17 : vector<16x8xf32>
    %20 = arith.subf %19, %10 : vector<16x8xf32>
    %21 = arith.truncf %20 : vector<16x8xf32> to vector<16x8xbf16>
    %cst_13 = arith.constant dense<0.000000e+00> : vector<16x8xf32>
    %22 = tpu.matmul %0, %21, %cst_13 {dimension_numbers = #tpu.dot_dimension_numbers<[1], [0], [0], [1], [0, 0, 1, 1], [], []>} : vector<16x16xbf16>, vector<16x8xbf16>, vector<16x8xf32> -> vector<16x8xf32>
    %cst_14 = arith.constant 2.000000e+00 : f32
    %23 = vector.broadcast %cst_14 : f32 to vector<16x8xf32>
    %24 = arith.mulf %23, %22 : vector<16x8xf32>
    %25 = arith.subf %24, %15 : vector<16x8xf32>
    %26 = tpu.concatenate %1, %5, %10, %15, %20, %25 in 1 : vector<16x8xf32>, vector<16x8xf32>, vector<16x8xf32>, vector<16x8xf32>, vector<16x8xf32>, vector<16x8xf32> -> vector<16x48xf32>
    %cst_15 = arith.constant dense<0.000000e+00> : vector<16x32xf32>
    %27 = tpu.matmul %26, %2, %cst_15 {dimension_numbers = #tpu.dot_dimension_numbers<[1], [0], [0], [1], [0, 0, 1, 1], [], []>} : vector<16x48xf32>, vector<48x32xf32>, vector<16x32xf32> -> vector<16x32xf32>
    %28 = vector.broadcast %3 : vector<1x32xf32> to vector<16x32xf32>
    %29 = arith.addf %27, %28 : vector<16x32xf32>
    %cst_16 = arith.constant 0.000000e+00 : f32
    %30 = vector.broadcast %cst_16 : f32 to vector<16x32xf32>
    %31 = arith.maximumf %29, %30 : vector<16x32xf32>
    %c0_17 = arith.constant 0 : index
    %c0_18 = arith.constant 0 : index
    %32 = vector.load %arg4[%c0_17, %c0_18] : memref<8x32xf32, #tpu.memory_space<vmem>>, vector<8x32xf32>
    %cst_19 = arith.constant dense<0.000000e+00> : vector<16x32xf32>
    %33 = tpu.matmul %1, %32, %cst_19 {dimension_numbers = #tpu.dot_dimension_numbers<[1], [0], [0], [1], [0, 0, 1, 1], [], []>} : vector<16x8xf32>, vector<8x32xf32>, vector<16x32xf32> -> vector<16x32xf32>
    %c0_20 = arith.constant 0 : index
    %c0_21 = arith.constant 0 : index
    %34 = vector.load %arg5[%c0_20, %c0_21] : memref<1x32xf32, #tpu.memory_space<vmem>>, vector<1x32xf32>
    %35 = vector.broadcast %34 : vector<1x32xf32> to vector<16x32xf32>
    %36 = arith.addf %33, %35 : vector<16x32xf32>
    %37 = arith.addf %31, %36 : vector<16x32xf32>
    %c0_22 = arith.constant 0 : index
    %c0_23 = arith.constant 0 : index
    %38 = vector.load %arg6[%c0_22, %c0_23] : memref<192x32xf32, #tpu.memory_space<vmem>>, vector<192x32xf32>
    %c0_24 = arith.constant 0 : index
    %c0_25 = arith.constant 0 : index
    %39 = vector.load %arg7[%c0_24, %c0_25] : memref<1x32xf32, #tpu.memory_space<vmem>>, vector<1x32xf32>
    %40 = arith.truncf %37 : vector<16x32xf32> to vector<16x32xbf16>
    %cst_26 = arith.constant dense<0.000000e+00> : vector<16x32xf32>
    %41 = tpu.matmul %0, %40, %cst_26 {dimension_numbers = #tpu.dot_dimension_numbers<[1], [0], [0], [1], [0, 0, 1, 1], [], []>} : vector<16x16xbf16>, vector<16x32xbf16>, vector<16x32xf32> -> vector<16x32xf32>
    %42 = arith.truncf %41 : vector<16x32xf32> to vector<16x32xbf16>
    %cst_27 = arith.constant dense<0.000000e+00> : vector<16x32xf32>
    %43 = tpu.matmul %0, %42, %cst_27 {dimension_numbers = #tpu.dot_dimension_numbers<[1], [0], [0], [1], [0, 0, 1, 1], [], []>} : vector<16x16xbf16>, vector<16x32xbf16>, vector<16x32xf32> -> vector<16x32xf32>
    %cst_28 = arith.constant 2.000000e+00 : f32
    %44 = vector.broadcast %cst_28 : f32 to vector<16x32xf32>
    %45 = arith.mulf %44, %43 : vector<16x32xf32>
    %46 = arith.subf %45, %37 : vector<16x32xf32>
    %47 = arith.truncf %46 : vector<16x32xf32> to vector<16x32xbf16>
    %cst_29 = arith.constant dense<0.000000e+00> : vector<16x32xf32>
    %48 = tpu.matmul %0, %47, %cst_29 {dimension_numbers = #tpu.dot_dimension_numbers<[1], [0], [0], [1], [0, 0, 1, 1], [], []>} : vector<16x16xbf16>, vector<16x32xbf16>, vector<16x32xf32> -> vector<16x32xf32>
    %cst_30 = arith.constant 2.000000e+00 : f32
    %49 = vector.broadcast %cst_30 : f32 to vector<16x32xf32>
    %50 = arith.mulf %49, %48 : vector<16x32xf32>
    %51 = arith.subf %50, %41 : vector<16x32xf32>
    %52 = arith.truncf %51 : vector<16x32xf32> to vector<16x32xbf16>
    %cst_31 = arith.constant dense<0.000000e+00> : vector<16x32xf32>
    %53 = tpu.matmul %0, %52, %cst_31 {dimension_numbers = #tpu.dot_dimension_numbers<[1], [0], [0], [1], [0, 0, 1, 1], [], []>} : vector<16x16xbf16>, vector<16x32xbf16>, vector<16x32xf32> -> vector<16x32xf32>
    %cst_32 = arith.constant 2.000000e+00 : f32
    %54 = vector.broadcast %cst_32 : f32 to vector<16x32xf32>
    %55 = arith.mulf %54, %53 : vector<16x32xf32>
    %56 = arith.subf %55, %46 : vector<16x32xf32>
    %57 = arith.truncf %56 : vector<16x32xf32> to vector<16x32xbf16>
    %cst_33 = arith.constant dense<0.000000e+00> : vector<16x32xf32>
    %58 = tpu.matmul %0, %57, %cst_33 {dimension_numbers = #tpu.dot_dimension_numbers<[1], [0], [0], [1], [0, 0, 1, 1], [], []>} : vector<16x16xbf16>, vector<16x32xbf16>, vector<16x32xf32> -> vector<16x32xf32>
    %cst_34 = arith.constant 2.000000e+00 : f32
    %59 = vector.broadcast %cst_34 : f32 to vector<16x32xf32>
    %60 = arith.mulf %59, %58 : vector<16x32xf32>
    %61 = arith.subf %60, %51 : vector<16x32xf32>
    %62 = tpu.concatenate %37, %41, %46, %51, %56, %61 in 1 : vector<16x32xf32>, vector<16x32xf32>, vector<16x32xf32>, vector<16x32xf32>, vector<16x32xf32>, vector<16x32xf32> -> vector<16x192xf32>
    %cst_35 = arith.constant dense<0.000000e+00> : vector<16x32xf32>
    %63 = tpu.matmul %62, %38, %cst_35 {dimension_numbers = #tpu.dot_dimension_numbers<[1], [0], [0], [1], [0, 0, 1, 1], [], []>} : vector<16x192xf32>, vector<192x32xf32>, vector<16x32xf32> -> vector<16x32xf32>
    %64 = vector.broadcast %39 : vector<1x32xf32> to vector<16x32xf32>
    %65 = arith.addf %63, %64 : vector<16x32xf32>
    %cst_36 = arith.constant 0.000000e+00 : f32
    %66 = vector.broadcast %cst_36 : f32 to vector<16x32xf32>
    %67 = arith.maximumf %65, %66 : vector<16x32xf32>
    %c0_37 = arith.constant 0 : index
    %c0_38 = arith.constant 0 : index
    %68 = vector.load %arg8[%c0_37, %c0_38] : memref<32x32xf32, #tpu.memory_space<vmem>>, vector<32x32xf32>
    %cst_39 = arith.constant dense<0.000000e+00> : vector<16x32xf32>
    %69 = tpu.matmul %37, %68, %cst_39 {dimension_numbers = #tpu.dot_dimension_numbers<[1], [0], [0], [1], [0, 0, 1, 1], [], []>} : vector<16x32xf32>, vector<32x32xf32>, vector<16x32xf32> -> vector<16x32xf32>
    %c0_40 = arith.constant 0 : index
    %c0_41 = arith.constant 0 : index
    %70 = vector.load %arg9[%c0_40, %c0_41] : memref<1x32xf32, #tpu.memory_space<vmem>>, vector<1x32xf32>
    %71 = vector.broadcast %70 : vector<1x32xf32> to vector<16x32xf32>
    %72 = arith.addf %69, %71 : vector<16x32xf32>
    %73 = arith.addf %67, %72 : vector<16x32xf32>
    %c0_42 = arith.constant 0 : index
    %c0_43 = arith.constant 0 : index
    %74 = vector.load %arg10[%c0_42, %c0_43] : memref<192x32xf32, #tpu.memory_space<vmem>>, vector<192x32xf32>
    %c0_44 = arith.constant 0 : index
    %c0_45 = arith.constant 0 : index
    %75 = vector.load %arg11[%c0_44, %c0_45] : memref<1x32xf32, #tpu.memory_space<vmem>>, vector<1x32xf32>
    %76 = arith.truncf %73 : vector<16x32xf32> to vector<16x32xbf16>
    %cst_46 = arith.constant dense<0.000000e+00> : vector<16x32xf32>
    %77 = tpu.matmul %0, %76, %cst_46 {dimension_numbers = #tpu.dot_dimension_numbers<[1], [0], [0], [1], [0, 0, 1, 1], [], []>} : vector<16x16xbf16>, vector<16x32xbf16>, vector<16x32xf32> -> vector<16x32xf32>
    %78 = arith.truncf %77 : vector<16x32xf32> to vector<16x32xbf16>
    %cst_47 = arith.constant dense<0.000000e+00> : vector<16x32xf32>
    %79 = tpu.matmul %0, %78, %cst_47 {dimension_numbers = #tpu.dot_dimension_numbers<[1], [0], [0], [1], [0, 0, 1, 1], [], []>} : vector<16x16xbf16>, vector<16x32xbf16>, vector<16x32xf32> -> vector<16x32xf32>
    %cst_48 = arith.constant 2.000000e+00 : f32
    %80 = vector.broadcast %cst_48 : f32 to vector<16x32xf32>
    %81 = arith.mulf %80, %79 : vector<16x32xf32>
    %82 = arith.subf %81, %73 : vector<16x32xf32>
    %83 = arith.truncf %82 : vector<16x32xf32> to vector<16x32xbf16>
    %cst_49 = arith.constant dense<0.000000e+00> : vector<16x32xf32>
    %84 = tpu.matmul %0, %83, %cst_49 {dimension_numbers = #tpu.dot_dimension_numbers<[1], [0], [0], [1], [0, 0, 1, 1], [], []>} : vector<16x16xbf16>, vector<16x32xbf16>, vector<16x32xf32> -> vector<16x32xf32>
    %cst_50 = arith.constant 2.000000e+00 : f32
    %85 = vector.broadcast %cst_50 : f32 to vector<16x32xf32>
    %86 = arith.mulf %85, %84 : vector<16x32xf32>
    %87 = arith.subf %86, %77 : vector<16x32xf32>
    %88 = arith.truncf %87 : vector<16x32xf32> to vector<16x32xbf16>
    %cst_51 = arith.constant dense<0.000000e+00> : vector<16x32xf32>
    %89 = tpu.matmul %0, %88, %cst_51 {dimension_numbers = #tpu.dot_dimension_numbers<[1], [0], [0], [1], [0, 0, 1, 1], [], []>} : vector<16x16xbf16>, vector<16x32xbf16>, vector<16x32xf32> -> vector<16x32xf32>
    %cst_52 = arith.constant 2.000000e+00 : f32
    %90 = vector.broadcast %cst_52 : f32 to vector<16x32xf32>
    %91 = arith.mulf %90, %89 : vector<16x32xf32>
    %92 = arith.subf %91, %82 : vector<16x32xf32>
    %93 = arith.truncf %92 : vector<16x32xf32> to vector<16x32xbf16>
    %cst_53 = arith.constant dense<0.000000e+00> : vector<16x32xf32>
    %94 = tpu.matmul %0, %93, %cst_53 {dimension_numbers = #tpu.dot_dimension_numbers<[1], [0], [0], [1], [0, 0, 1, 1], [], []>} : vector<16x16xbf16>, vector<16x32xbf16>, vector<16x32xf32> -> vector<16x32xf32>
    %cst_54 = arith.constant 2.000000e+00 : f32
    %95 = vector.broadcast %cst_54 : f32 to vector<16x32xf32>
    %96 = arith.mulf %95, %94 : vector<16x32xf32>
    %97 = arith.subf %96, %87 : vector<16x32xf32>
    %98 = tpu.concatenate %73, %77, %82, %87, %92, %97 in 1 : vector<16x32xf32>, vector<16x32xf32>, vector<16x32xf32>, vector<16x32xf32>, vector<16x32xf32>, vector<16x32xf32> -> vector<16x192xf32>
    %cst_55 = arith.constant dense<0.000000e+00> : vector<16x32xf32>
    %99 = tpu.matmul %98, %74, %cst_55 {dimension_numbers = #tpu.dot_dimension_numbers<[1], [0], [0], [1], [0, 0, 1, 1], [], []>} : vector<16x192xf32>, vector<192x32xf32>, vector<16x32xf32> -> vector<16x32xf32>
    %100 = vector.broadcast %75 : vector<1x32xf32> to vector<16x32xf32>
    %101 = arith.addf %99, %100 : vector<16x32xf32>
    %cst_56 = arith.constant 0.000000e+00 : f32
    %102 = vector.broadcast %cst_56 : f32 to vector<16x32xf32>
    %103 = arith.maximumf %101, %102 : vector<16x32xf32>
    %c0_57 = arith.constant 0 : index
    %c0_58 = arith.constant 0 : index
    %104 = vector.load %arg12[%c0_57, %c0_58] : memref<32x32xf32, #tpu.memory_space<vmem>>, vector<32x32xf32>
    %cst_59 = arith.constant dense<0.000000e+00> : vector<16x32xf32>
    %105 = tpu.matmul %73, %104, %cst_59 {dimension_numbers = #tpu.dot_dimension_numbers<[1], [0], [0], [1], [0, 0, 1, 1], [], []>} : vector<16x32xf32>, vector<32x32xf32>, vector<16x32xf32> -> vector<16x32xf32>
    %c0_60 = arith.constant 0 : index
    %c0_61 = arith.constant 0 : index
    %106 = vector.load %arg13[%c0_60, %c0_61] : memref<1x32xf32, #tpu.memory_space<vmem>>, vector<1x32xf32>
    %107 = vector.broadcast %106 : vector<1x32xf32> to vector<16x32xf32>
    %108 = arith.addf %105, %107 : vector<16x32xf32>
    %109 = arith.addf %103, %108 : vector<16x32xf32>
    %110 = tpu.concatenate %109, %1 in 1 : vector<16x32xf32>, vector<16x8xf32> -> vector<16x40xf32>
    %c0_62 = arith.constant 0 : index
    %c0_63 = arith.constant 0 : index
    %111 = vector.load %arg14[%c0_62, %c0_63] : memref<80x128xf32, #tpu.memory_space<vmem>>, vector<80x128xf32>
    %c0_64 = arith.constant 0 : index
    %c0_65 = arith.constant 0 : index
    %112 = vector.load %arg15[%c0_64, %c0_65] : memref<1x128xf32, #tpu.memory_space<vmem>>, vector<1x128xf32>
    %113 = arith.truncf %110 : vector<16x40xf32> to vector<16x40xbf16>
    %cst_66 = arith.constant dense<0.000000e+00> : vector<16x40xf32>
    %114 = tpu.matmul %0, %113, %cst_66 {dimension_numbers = #tpu.dot_dimension_numbers<[1], [0], [0], [1], [0, 0, 1, 1], [], []>} : vector<16x16xbf16>, vector<16x40xbf16>, vector<16x40xf32> -> vector<16x40xf32>
    %115 = tpu.concatenate %110, %114 in 1 : vector<16x40xf32>, vector<16x40xf32> -> vector<16x80xf32>
    %cst_67 = arith.constant dense<0.000000e+00> : vector<16x128xf32>
    %116 = tpu.matmul %115, %111, %cst_67 {dimension_numbers = #tpu.dot_dimension_numbers<[1], [0], [0], [1], [0, 0, 1, 1], [], []>} : vector<16x80xf32>, vector<80x128xf32>, vector<16x128xf32> -> vector<16x128xf32>
    %117 = vector.broadcast %112 : vector<1x128xf32> to vector<16x128xf32>
    %118 = arith.addf %116, %117 : vector<16x128xf32>
    %c0_68 = arith.constant 0 : index
    %c0_69 = arith.constant 0 : index
    %119 = vector.load %arg16[%c0_68, %c0_69] : memref<16x128xf32, #tpu.memory_space<vmem>>, vector<16x128xf32>
    tpu.vector_store %arg16[%c0_68, %c0_69], %118 {strides = array<i32>} : memref<16x128xf32, #tpu.memory_space<vmem>>, vector<16x128xf32>,
    return
  }
}

</mosaic_0001>

<llo_original>
// kernel: graph_resnet_forward.1
$region0: #{graph_resnet_forward.1}
  #allocation0 [shape = 'u32[]', space=smem, size = 0x4, offset = 0x4, fixed_abs, tag = 'smem constant byte address 0x4 - core index']
  #allocation1 [shape = 'u32[144,128]{1,0:T(1,128)}', space=vmem, size = 0x12000, scoped, tag = 'internal scratch']
  %s0 = inlined_call_operand.vmem [shape: bf16[16,16], index: 0, kind: input, shape index: {}]
  %s1 = inlined_call_operand.vmem [shape: f32[16,8], index: 1, kind: input, shape index: {}]
  %s2 = inlined_call_operand.vmem [shape: f32[48,32], index: 2, kind: input, shape index: {}]
  %s3 = inlined_call_operand.vmem [shape: f32[1,32], index: 3, kind: input, shape index: {}]
  %s4 = inlined_call_operand.vmem [shape: f32[8,32], index: 4, kind: input, shape index: {}]
  %s5 = inlined_call_operand.vmem [shape: f32[1,32], index: 5, kind: input, shape index: {}]
  %s6 = inlined_call_operand.vmem [shape: f32[192,32], index: 6, kind: input, shape index: {}]
  %s7 = inlined_call_operand.vmem [shape: f32[1,32], index: 7, kind: input, shape index: {}]
  %s8 = inlined_call_operand.vmem [shape: f32[32,32], index: 8, kind: input, shape index: {}]
  %s9 = inlined_call_operand.vmem [shape: f32[1,32], index: 9, kind: input, shape index: {}]
  %s10 = inlined_call_operand.hbm [shape: f32[192,32], index: 10, kind: input, shape index: {}]
  %s11 = inlined_call_operand.vmem [shape: f32[1,32], index: 11, kind: input, shape index: {}]
  %s12 = inlined_call_operand.vmem [shape: f32[32,32], index: 12, kind: input, shape index: {}]
  %s13 = inlined_call_operand.vmem [shape: f32[1,32], index: 13, kind: input, shape index: {}]
  %s14 = inlined_call_operand.vmem [shape: f32[80,128], index: 14, kind: input, shape index: {}]
  %s15 = inlined_call_operand.vmem [shape: f32[1,128], index: 15, kind: input, shape index: {}]
  %s16 = inlined_call_operand.vmem [shape: f32[16,128], index: 16, kind: output, shape index: {}]
  %s17 = sld [smem:[#allocation0]]
  $region78: #{graph_resnet_forward.1} parent=0
    _
  %s19 = ssub.s32 1, %s17
  %s20 = scalar_select 0, %s19, %s17
  $region1: #{graph_resnet_forward.1} parent=0
    #allocation2 [shape = 'u8[98304]{0}', space=vmem, size = 0x18000, scoped, tag = 'input window, operand 10, single buffered']
    #allocation3 [shape = 's32[1]{0}', space=sflag, size = 0x4, scoped, tag = 'scoped memory for graph_resnet_forward.1']
    %21 = vsyncpa [#allocation3], 0
    // Predicated region
    $region2: #{graph_resnet_forward.1} parent=1 // pred_check
      _
    $region3: #{graph_resnet_forward.1} parent=1 // pred_check_branch
      %23 = sbr.rel (0) target = $region5
    $region4: #{graph_resnet_forward.1} parent=1 // pred_region
      _
    $region5: #{graph_resnet_forward.1} parent=1 // pred_fallthru
      _
    // Predicated region
    $region6: #{graph_resnet_forward.1} parent=1 // pred_check
      _
    $region7: #{graph_resnet_forward.1} parent=1 // pred_check_branch
      %25 = sbr.rel (0) target = $region9
    $region8: #{graph_resnet_forward.1} parent=1 // pred_region
      _
    $region9: #{graph_resnet_forward.1} parent=1 // pred_fallthru
      _
    // Predicated region
    $region10: #{graph_resnet_forward.1} parent=1 // pred_check
      _
    $region11: #{graph_resnet_forward.1} parent=1 // pred_check_branch
      %27 = sbr.rel (0) target = $region13
    $region12: #{graph_resnet_forward.1} parent=1 // pred_region
      _
    $region13: #{graph_resnet_forward.1} parent=1 // pred_fallthru
      _
    // Predicated region
    $region14: #{graph_resnet_forward.1} parent=1 // pred_check
      _
    $region15: #{graph_resnet_forward.1} parent=1 // pred_check_branch
      %29 = sbr.rel (0) target = $region17
    $region16: #{graph_resnet_forward.1} parent=1 // pred_region
      _
    $region17: #{graph_resnet_forward.1} parent=1 // pred_fallthru
      _
    // Predicated region
    $region18: #{graph_resnet_forward.1} parent=1 // pred_check
      _
    $region19: #{graph_resnet_forward.1} parent=1 // pred_check_branch
      %31 = sbr.rel (0) target = $region21
    $region20: #{graph_resnet_forward.1} parent=1 // pred_region
      _
    $region21: #{graph_resnet_forward.1} parent=1 // pred_fallthru
      _
    // Predicated region
    $region22: #{graph_resnet_forward.1} parent=1 // pred_check
      _
    $region23: #{graph_resnet_forward.1} parent=1 // pred_check_branch
      %33 = sbr.rel (0) target = $region25
    $region24: #{graph_resnet_forward.1} parent=1 // pred_region
      _
    $region25: #{graph_resnet_forward.1} parent=1 // pred_fallthru
      _
    // Predicated region
    $region26: #{graph_resnet_forward.1} parent=1 // pred_check
      _
    $region27: #{graph_resnet_forward.1} parent=1 // pred_check_branch
      %35 = sbr.rel (0) target = $region29
    $region28: #{graph_resnet_forward.1} parent=1 // pred_region
      _
    $region29: #{graph_resnet_forward.1} parent=1 // pred_fallthru
      _
    // Predicated region
    $region30: #{graph_resnet_forward.1} parent=1 // pred_check
      _
    $region31: #{graph_resnet_forward.1} parent=1 // pred_check_branch
      %37 = sbr.rel (0) target = $region33
    $region32: #{graph_resnet_forward.1} parent=1 // pred_region
      _
    $region33: #{graph_resnet_forward.1} parent=1 // pred_fallthru
      _
    // Predicated region
    $region34: #{graph_resnet_forward.1} parent=1 // pred_check
      _
    $region35: #{graph_resnet_forward.1} parent=1 // pred_check_branch
      %39 = sbr.rel (0) target = $region37
    $region36: #{graph_resnet_forward.1} parent=1 // pred_region
      _
    $region37: #{graph_resnet_forward.1} parent=1 // pred_fallthru
      _
    // Predicated region
    $region38: #{graph_resnet_forward.1} parent=1 // pred_check
      _
    $region39: #{graph_resnet_forward.1} parent=1 // pred_check_branch
      %41 = sbr.rel (0) target = $region41
    $region40: #{graph_resnet_forward.1} parent=1 // pred_region
      _
    $region41: #{graph_resnet_forward.1} parent=1 // pred_fallthru
      _
    // Predicated region
    $region42: #{graph_resnet_forward.1} parent=1 // pred_check
      _
    $region43: #{graph_resnet_forward.1} parent=1 // pred_check_branch
      %43 = sbr.rel (0) target = $region45
    $region44: #{graph_resnet_forward.1} parent=1 // pred_region
      %s45 = ssub.s32 3072, 3072
      %46 = vsyncadd [#allocation3], %s45
      %s47 = sshll.u32 [#allocation2], 4
      %s48 = int_to_ptr.vmem [resolvable:$true] %s47
      %53 = dma.hbm_to_vmem [thread:$0]  %s10, 3072, %s48, [#allocation3], 128, 128, 8
    $region45: #{graph_resnet_forward.1} parent=1 // pred_fallthru
      _
    // Predicated region
    $region46: #{graph_resnet_forward.1} parent=1 // pred_check
      _
    $region47: #{graph_resnet_forward.1} parent=1 // pred_check_branch
      %55 = sbr.rel (0) target = $region49
    $region48: #{graph_resnet_forward.1} parent=1 // pred_region
      _
    $region49: #{graph_resnet_forward.1} parent=1 // pred_fallthru
      _
    // Predicated region
    $region50: #{graph_resnet_forward.1} parent=1 // pred_check
      _
    $region51: #{graph_resnet_forward.1} parent=1 // pred_check_branch
      %57 = sbr.rel (0) target = $region53
    $region52: #{graph_resnet_forward.1} parent=1 // pred_region
      _
    $region53: #{graph_resnet_forward.1} parent=1 // pred_fallthru
      _
    // Predicated region
    $region54: #{graph_resnet_forward.1} parent=1 // pred_check
      _
    $region55: #{graph_resnet_forward.1} parent=1 // pred_check_branch
      %59 = sbr.rel (0) target = $region57
    $region56: #{graph_resnet_forward.1} parent=1 // pred_region
      _
    $region57: #{graph_resnet_forward.1} parent=1 // pred_fallthru
      _
    // Predicated region
    $region58: #{graph_resnet_forward.1} parent=1 // pred_check
      _
    $region59: #{graph_resnet_forward.1} parent=1 // pred_check_branch
      %61 = sbr.rel (0) target = $region61
    $region60: #{graph_resnet_forward.1} parent=1 // pred_region
      _
    $region61: #{graph_resnet_forward.1} parent=1 // pred_fallthru
      _
    // Predicated region
    $region62: #{graph_resnet_forward.1} parent=1 // pred_check
      _
    $region63: #{graph_resnet_forward.1} parent=1 // pred_check_branch
      %63 = sbr.rel (0) target = $region65
    $region64: #{graph_resnet_forward.1} parent=1 // pred_region
      _
    $region65: #{graph_resnet_forward.1} parent=1 // pred_fallthru
      _
    // Predicated region
    $region66: #{graph_resnet_forward.1} parent=1 // pred_check
      _
    $region67: #{graph_resnet_forward.1} parent=1 // pred_check_branch
      %65 = sbr.rel (0) target = $region69
    $region68: #{graph_resnet_forward.1} parent=1 // pred_region
      %66 = dma.done [#allocation3], 3072
    $region69: #{graph_resnet_forward.1} parent=1 // pred_fallthru
      _
    %v68 = vld [vmem:[%s0] sm:$0xf]
    %v69 = vld [vmem:[%s0 + $0x4] sm:$0xf]
    %v70 = vld [vmem:[%s1] sm:$0xff]
    %v71 = vld [vmem:[%s1 + $0x8] sm:$0xff]
    %v72 = vld [vmem:[%s2] sm:$0xff]
    %v73 = vld [vmem:[%s2 + $0x8] sm:$0xff]
    %v74 = vld [vmem:[%s2 + $0x10] sm:$0xff]
    %v75 = vld [vmem:[%s2 + $0x18] sm:$0xff]
    %v76 = vld [vmem:[%s2 + $0x20] sm:$0xff]
    %v77 = vld [vmem:[%s2 + $0x28] sm:$0xff]
    %v78 = vld [vmem:[%s3] sm:$0x1]
    %v79 = vpack.c.bf16 %v71, %v70
    %v82 = vunpack.c.l.b16 %v68
    %v83 = vunpack.c.l.b16 %v69
    %v84 = vpack.c.b16 %v83, %v82
    %vm85 = vcmask 130048
    %v87 = vsel %vm85, %v84, 0
    %89 = vmatprep.subr.bf16.mxu0 0
    %90 = vmatpush1.bf16.msra.mxu0 %v79
    %91 = vmatprep.subr.bf16.mxu0 0
    %92 = vmatpush1.bf16.msra.mxu0 0
    %93 = vmatprep.subr.bf16.mxu0 0
    %94 = vmatpush1.bf16.msra.mxu0 0
    %95 = vmatprep.subr.bf16.mxu0 0
    %96 = vmatpush1.bf16.msra.mxu0 0
    %97 = vmatprep.subr.bf16.mxu0 0
    %98 = vmatpush1.bf16.msra.mxu0 0
    %99 = vmatprep.subr.bf16.mxu0 0
    %100 = vmatpush1.bf16.msra.mxu0 0
    %101 = vmatprep.subr.bf16.mxu0 0
    %102 = vmatpush1.bf16.msra.mxu0 0
    %103 = vmatprep.subr.bf16.mxu0 0
    %104 = vmatpush1.bf16.msra.mxu0 0
    %105 = vmatprep.subr.bf16.mxu0 0
    %106 = vmatpush1.bf16.msra.mxu0 0
    %107 = vmatprep.subr.bf16.mxu0 0
    %108 = vmatpush1.bf16.msra.mxu0 0
    %109 = vmatprep.subr.bf16.mxu0 0
    %110 = vmatpush1.bf16.msra.mxu0 0
    %111 = vmatprep.subr.bf16.mxu0 0
    %112 = vmatpush1.bf16.msra.mxu0 0
    %113 = vmatprep.subr.bf16.mxu0 0
    %114 = vmatpush1.bf16.msra.mxu0 0
    %115 = vmatprep.subr.bf16.mxu0 0
    %116 = vmatpush1.bf16.msra.mxu0 0
    %117 = vmatprep.subr.bf16.mxu0 0
    %118 = vmatpush1.bf16.msra.mxu0 0
    %119 = vmatprep.subr.bf16.mxu0 0
    %120 = vmatpush1.bf16.msra.mxu0 0
    %121 = vmatprep.mubr.bf16.mxu0 0
    %122 = vmatmul.mubr.bf16.gmra.mrb[0].mxu0 %v87
    %v123 = vpop.f32.mrb[0].mxu0
    %v124 = vadd.f32 0.0, %v123
    %v125 = vpop.f32.mrb[0].mxu0
    %v126 = vpop.f32.mrb[0].mxu0
    %v127 = vadd.f32 0.0, %v126
    %v128 = vpop.f32.mrb[0].mxu0
    %129 = vdwg.mxu0
    %v130 = vpack.c.bf16 %v127, %v124
    %131 = vmatprep.subr.bf16.mxu0 0
    %132 = vmatpush1.bf16.msra.mxu0 %v130
    %133 = vmatprep.subr.bf16.mxu0 0
    %134 = vmatpush1.bf16.msra.mxu0 0
    %135 = vmatprep.subr.bf16.mxu0 0
    %136 = vmatpush1.bf16.msra.mxu0 0
    %137 = vmatprep.subr.bf16.mxu0 0
    %138 = vmatpush1.bf16.msra.mxu0 0
    %139 = vmatprep.subr.bf16.mxu0 0
    %140 = vmatpush1.bf16.msra.mxu0 0
    %141 = vmatprep.subr.bf16.mxu0 0
    %142 = vmatpush1.bf16.msra.mxu0 0
    %143 = vmatprep.subr.bf16.mxu0 0
    %144 = vmatpush1.bf16.msra.mxu0 0
    %145 = vmatprep.subr.bf16.mxu0 0
    %146 = vmatpush1.bf16.msra.mxu0 0
    %147 = vmatprep.subr.bf16.mxu0 0
    %148 = vmatpush1.bf16.msra.mxu0 0
    %149 = vmatprep.subr.bf16.mxu0 0
    %150 = vmatpush1.bf16.msra.mxu0 0
    %151 = vmatprep.subr.bf16.mxu0 0
    %152 = vmatpush1.bf16.msra.mxu0 0
    %153 = vmatprep.subr.bf16.mxu0 0
    %154 = vmatpush1.bf16.msra.mxu0 0
    %155 = vmatprep.subr.bf16.mxu0 0
    %156 = vmatpush1.bf16.msra.mxu0 0
    %157 = vmatprep.subr.bf16.mxu0 0
    %158 = vmatpush1.bf16.msra.mxu0 0
    %159 = vmatprep.subr.bf16.mxu0 0
    %160 = vmatpush1.bf16.msra.mxu0 0
    %161 = vmatprep.subr.bf16.mxu0 0
    %162 = vmatpush1.bf16.msra.mxu0 0
    %163 = vmatprep.mubr.bf16.mxu0 0
    %164 = vmatmul.mubr.bf16.gmra.mrb[0].mxu0 %v87
    %v165 = vpop.f32.mrb[0].mxu0
    %v166 = vadd.f32 0.0, %v165
    %v167 = vpop.f32.mrb[0].mxu0
    %v168 = vpop.f32.mrb[0].mxu0
    %v169 = vadd.f32 0.0, %v168
    %v170 = vpop.f32.mrb[0].mxu0
    %171 = vdwg.mxu0
    %v172 = vmul.f32 %v166, 2.0
    %v173 = vmul.f32 %v169, 2.0
    %v174 = vsub.f32 %v172, %v70
    %v175 = vsub.f32 %v173, %v71
    %v176 = vpack.c.bf16 %v175, %v174
    %177 = vmatprep.subr.bf16.mxu0 0
    %178 = vmatpush1.bf16.msra.mxu0 %v176
    %179 = vmatprep.subr.bf16.mxu0 0
    %180 = vmatpush1.bf16.msra.mxu0 0
    %181 = vmatprep.subr.bf16.mxu0 0
    %182 = vmatpush1.bf16.msra.mxu0 0
    %183 = vmatprep.subr.bf16.mxu0 0
    %184 = vmatpush1.bf16.msra.mxu0 0
    %185 = vmatprep.subr.bf16.mxu0 0
    %186 = vmatpush1.bf16.msra.mxu0 0
    %187 = vmatprep.subr.bf16.mxu0 0
    %188 = vmatpush1.bf16.msra.mxu0 0
    %189 = vmatprep.subr.bf16.mxu0 0
    %190 = vmatpush1.bf16.msra.mxu0 0
    %191 = vmatprep.subr.bf16.mxu0 0
    %192 = vmatpush1.bf16.msra.mxu0 0
    %193 = vmatprep.subr.bf16.mxu0 0
    %194 = vmatpush1.bf16.msra.mxu0 0
    %195 = vmatprep.subr.bf16.mxu0 0
    %196 = vmatpush1.bf16.msra.mxu0 0
    %197 = vmatprep.subr.bf16.mxu0 0
    %198 = vmatpush1.bf16.msra.mxu0 0
    %199 = vmatprep.subr.bf16.mxu0 0
    %200 = vmatpush1.bf16.msra.mxu0 0
    %201 = vmatprep.subr.bf16.mxu0 0
    %202 = vmatpush1.bf16.msra.mxu0 0
    %203 = vmatprep.subr.bf16.mxu0 0
    %204 = vmatpush1.bf16.msra.mxu0 0
    %205 = vmatprep.subr.bf16.mxu0 0
    %206 = vmatpush1.bf16.msra.mxu0 0
    %207 = vmatprep.subr.bf16.mxu0 0
    %208 = vmatpush1.bf16.msra.mxu0 0
    %209 = vmatprep.mubr.bf16.mxu0 0
    %210 = vmatmul.mubr.bf16.gmra.mrb[0].mxu0 %v87
    %v211 = vpop.f32.mrb[0].mxu0
    %v212 = vadd.f32 0.0, %v211
    %v213 = vpop.f32.mrb[0].mxu0
    %v214 = vpop.f32.mrb[0].mxu0
    %v215 = vadd.f32 0.0, %v214
    %v216 = vpop.f32.mrb[0].mxu0
    %217 = vdwg.mxu0
    %v218 = vmul.f32 %v212, 2.0
    %v219 = vmul.f32 %v215, 2.0
    %v220 = vsub.f32 %v218, %v124
    %v221 = vsub.f32 %v219, %v127
    %v222 = vpack.c.bf16 %v221, %v220
    %223 = vmatprep.subr.bf16.mxu0 0
    %224 = vmatpush1.bf16.msra.mxu0 %v222
    %225 = vmatprep.subr.bf16.mxu0 0
    %226 = vmatpush1.bf16.msra.mxu0 0
    %227 = vmatprep.subr.bf16.mxu0 0
    %228 = vmatpush1.bf16.msra.mxu0 0
    %229 = vmatprep.subr.bf16.mxu0 0
    %230 = vmatpush1.bf16.msra.mxu0 0
    %231 = vmatprep.subr.bf16.mxu0 0
    %232 = vmatpush1.bf16.msra.mxu0 0
    %233 = vmatprep.subr.bf16.mxu0 0
    %234 = vmatpush1.bf16.msra.mxu0 0
    %235 = vmatprep.subr.bf16.mxu0 0
    %236 = vmatpush1.bf16.msra.mxu0 0
    %237 = vmatprep.subr.bf16.mxu0 0
    %238 = vmatpush1.bf16.msra.mxu0 0
    %239 = vmatprep.subr.bf16.mxu0 0
    %240 = vmatpush1.bf16.msra.mxu0 0
    %241 = vmatprep.subr.bf16.mxu0 0
    %242 = vmatpush1.bf16.msra.mxu0 0
    %243 = vmatprep.subr.bf16.mxu0 0
    %244 = vmatpush1.bf16.msra.mxu0 0
    %245 = vmatprep.subr.bf16.mxu0 0
    %246 = vmatpush1.bf16.msra.mxu0 0
    %247 = vmatprep.subr.bf16.mxu0 0
    %248 = vmatpush1.bf16.msra.mxu0 0
    %249 = vmatprep.subr.bf16.mxu0 0
    %250 = vmatpush1.bf16.msra.mxu0 0
    %251 = vmatprep.subr.bf16.mxu0 0
    %252 = vmatpush1.bf16.msra.mxu0 0
    %253 = vmatprep.subr.bf16.mxu0 0
    %254 = vmatpush1.bf16.msra.mxu0 0
    %255 = vmatprep.mubr.bf16.mxu0 0
    %256 = vmatmul.mubr.bf16.gmra.mrb[0].mxu0 %v87
    %v257 = vpop.f32.mrb[0].mxu0
    %v258 = vadd.f32 0.0, %v257
    %v259 = vpop.f32.mrb[0].mxu0
    %v260 = vpop.f32.mrb[0].mxu0
    %v261 = vadd.f32 0.0, %v260
    %v262 = vpop.f32.mrb[0].mxu0
    %263 = vdwg.mxu0
    %v264 = vmul.f32 %v258, 2.0
    %v265 = vmul.f32 %v261, 2.0
    %v266 = vsub.f32 %v264, %v174
    %v267 = vsub.f32 %v265, %v175
    %v268 = vpack.c.bf16 %v267, %v266
    %269 = vmatprep.subr.bf16.mxu0 0
    %270 = vmatpush1.bf16.msra.mxu0 %v268
    %271 = vmatprep.subr.bf16.mxu0 0
    %272 = vmatpush1.bf16.msra.mxu0 0
    %273 = vmatprep.subr.bf16.mxu0 0
    %274 = vmatpush1.bf16.msra.mxu0 0
    %275 = vmatprep.subr.bf16.mxu0 0
    %276 = vmatpush1.bf16.msra.mxu0 0
    %277 = vmatprep.subr.bf16.mxu0 0
    %278 = vmatpush1.bf16.msra.mxu0 0
    %279 = vmatprep.subr.bf16.mxu0 0
    %280 = vmatpush1.bf16.msra.mxu0 0
    %281 = vmatprep.subr.bf16.mxu0 0
    %282 = vmatpush1.bf16.msra.mxu0 0
    %283 = vmatprep.subr.bf16.mxu0 0
    %284 = vmatpush1.bf16.msra.mxu0 0
    %285 = vmatprep.subr.bf16.mxu0 0
    %286 = vmatpush1.bf16.msra.mxu0 0
    %287 = vmatprep.subr.bf16.mxu0 0
    %288 = vmatpush1.bf16.msra.mxu0 0
    %289 = vmatprep.subr.bf16.mxu0 0
    %290 = vmatpush1.bf16.msra.mxu0 0
    %291 = vmatprep.subr.bf16.mxu0 0
    %292 = vmatpush1.bf16.msra.mxu0 0
    %293 = vmatprep.subr.bf16.mxu0 0
    %294 = vmatpush1.bf16.msra.mxu0 0
    %295 = vmatprep.subr.bf16.mxu0 0
    %296 = vmatpush1.bf16.msra.mxu0 0
    %297 = vmatprep.subr.bf16.mxu0 0
    %298 = vmatpush1.bf16.msra.mxu0 0
    %299 = vmatprep.subr.bf16.mxu0 0
    %300 = vmatpush1.bf16.msra.mxu0 0
    %301 = vmatprep.mubr.bf16.mxu0 0
    %302 = vmatmul.mubr.bf16.gmra.mrb[0].mxu0 %v87
    %v303 = vpop.f32.mrb[0].mxu0
    %v304 = vadd.f32 0.0, %v303
    %v305 = vpop.f32.mrb[0].mxu0
    %v306 = vpop.f32.mrb[0].mxu0
    %v307 = vadd.f32 0.0, %v306
    %v308 = vpop.f32.mrb[0].mxu0
    %309 = vdwg.mxu0
    %v310 = vmul.f32 %v304, 2.0
    %v311 = vmul.f32 %v307, 2.0
    %v312 = vsub.f32 %v310, %v220
    %v313 = vsub.f32 %v311, %v221
    %316 = vrot.lane.b32.xlu0 %v124, 8
    %v317 = vpop.permute.xlu0 %316
    %318 = vrot.lane.b32.xlu0 %v127, 8
    %v319 = vpop.permute.xlu0 %318
    %324 = vrot.lane.b32.xlu0 %v174, 16
    %v325 = vpop.permute.xlu0 %324
    %326 = vrot.lane.b32.xlu0 %v175, 16
    %v327 = vpop.permute.xlu0 %326
    %332 = vrot.lane.b32.xlu0 %v220, 24
    %v333 = vpop.permute.xlu0 %332
    %334 = vrot.lane.b32.xlu0 %v221, 24
    %v335 = vpop.permute.xlu0 %334
    %340 = vrot.lane.b32.xlu0 %v266, 32
    %v341 = vpop.permute.xlu0 %340
    %342 = vrot.lane.b32.xlu0 %v267, 32
    %v343 = vpop.permute.xlu0 %342
    %348 = vrot.lane.b32.xlu0 %v312, 40
    %v349 = vpop.permute.xlu0 %348
    %350 = vrot.lane.b32.xlu0 %v313, 40
    %v351 = vpop.permute.xlu0 %350
    %vm354 = vcmask 64512
    %v355 = vsel %vm354, %v70, %v317
    %v356 = vsel %vm354, %v71, %v319
    %v357 = vsel %vm85, %v355, %v325
    %v358 = vsel %vm85, %v356, %v327
    %vm359 = vcmask 195584
    %v360 = vsel %vm359, %v357, %v333
    %v361 = vsel %vm359, %v358, %v335
    %vm362 = vcmask 261120
    %v363 = vsel %vm362, %v360, %v341
    %v364 = vsel %vm362, %v361, %v343
    %vm365 = vcmask 326656
    %v366 = vsel %vm365, %v363, %v349
    %v367 = vsel %vm365, %v364, %v351
    %v369 = vlaneseq
    %v370 = vshrl.u32 %v369, 7
    %v371 = vsub.s32 0, %v370
    %v372 = vrot.slane %v78, %v371
    %vm374 = vcmask 392192
    %v376 = vsel %vm374, %v366, 0
    %v379 = vsel %vm374, %v367, 0
    %381 = vmatprep.subr.mxu0 0.0
    %382 = vmatpush1.msra.mxu0 %v72
    %383 = vmatprep.subr.mxu0 0.0
    %384 = vmatpush1.msra.mxu0 %v73
    %385 = vmatprep.subr.mxu0 0.0
    %386 = vmatpush1.msra.mxu0 %v74
    %387 = vmatprep.subr.mxu0 0.0
    %388 = vmatpush1.msra.mxu0 %v75
    %389 = vmatprep.subr.mxu0 0.0
    %390 = vmatpush1.msra.mxu0 %v76
    %391 = vmatprep.subr.mxu0 0.0
    %392 = vmatpush1.msra.mxu0 %v77
    %393 = vmatprep.subr.mxu0 0.0
    %394 = vmatpush1.msra.mxu0 0.0
    %395 = vmatprep.subr.mxu0 0.0
    %396 = vmatpush1.msra.mxu0 0.0
    %397 = vmatprep.subr.mxu0 0.0
    %398 = vmatpush1.msra.mxu0 0.0
    %399 = vmatprep.subr.mxu0 0.0
    %400 = vmatpush1.msra.mxu0 0.0
    %401 = vmatprep.subr.mxu0 0.0
    %402 = vmatpush1.msra.mxu0 0.0
    %403 = vmatprep.subr.mxu0 0.0
    %404 = vmatpush1.msra.mxu0 0.0
    %405 = vmatprep.subr.mxu0 0.0
    %406 = vmatpush1.msra.mxu0 0.0
    %407 = vmatprep.subr.mxu0 0.0
    %408 = vmatpush1.msra.mxu0 0.0
    %409 = vmatprep.subr.mxu0 0.0
    %410 = vmatpush1.msra.mxu0 0.0
    %411 = vmatprep.subr.mxu0 0.0
    %412 = vmatpush1.msra.mxu0 0.0
    %413 = vmatprep.subr.mxu0 0.0
    %414 = vmatpush1.msra.mxu0 0.0
    %415 = vmatprep.subr.mxu0 0.0
    %416 = vmatpush1.msra.mxu0 0.0
    %417 = vmatprep.subr.mxu0 0.0
    %418 = vmatpush1.msra.mxu0 0.0
    %419 = vmatprep.subr.mxu0 0.0
    %420 = vmatpush1.msra.mxu0 0.0
    %421 = vmatprep.subr.mxu0 0.0
    %422 = vmatpush1.msra.mxu0 0.0
    %423 = vmatprep.subr.mxu0 0.0
    %424 = vmatpush1.msra.mxu0 0.0
    %425 = vmatprep.subr.mxu0 0.0
    %426 = vmatpush1.msra.mxu0 0.0
    %427 = vmatprep.subr.mxu0 0.0
    %428 = vmatpush1.msra.mxu0 0.0
    %429 = vmatprep.subr.mxu0 0.0
    %430 = vmatpush1.msra.mxu0 0.0
    %431 = vmatprep.subr.mxu0 0.0
    %432 = vmatpush1.msra.mxu0 0.0
    %433 = vmatprep.subr.mxu0 0.0
    %434 = vmatpush1.msra.mxu0 0.0
    %435 = vmatprep.subr.mxu0 0.0
    %436 = vmatpush1.msra.mxu0 0.0
    %437 = vmatprep.subr.mxu0 0.0
    %438 = vmatpush1.msra.mxu0 0.0
    %439 = vmatprep.subr.mxu0 0.0
    %440 = vmatpush1.msra.mxu0 0.0
    %441 = vmatprep.subr.mxu0 0.0
    %442 = vmatpush1.msra.mxu0 0.0
    %443 = vmatprep.subr.mxu0 0.0
    %444 = vmatpush1.msra.mxu0 0.0
    %445 = vmatprep.mubr.f32.mxu0 0.0
    %446 = vmatmul.mubr.f32.gmra.mrb[0].mxu0 %v376
    %v447 = vpop.f32.mrb[0].mxu0
    %v448 = vadd.f32 %v372, %v447
    %v449 = vpop.f32.mrb[0].mxu0
    %450 = vmatprep.mubr.f32.mxu0 0.0
    %451 = vmatmul.mubr.f32.gmra.mrb[0].mxu0 %v379
    %v452 = vpop.f32.mrb[0].mxu0
    %v453 = vadd.f32 %v372, %v452
    %v454 = vpop.f32.mrb[0].mxu0
    %455 = vdwg.mxu0
    %v456 = vmax.f32 %v448, 0.0
    %v457 = vmax.f32 %v453, 0.0
    %v458 = vld [vmem:[%s4] sm:$0xff]
    %v459 = vld [vmem:[%s5] sm:$0x1]
    %v461 = vlaneseq
    %v462 = vshrl.u32 %v461, 7
    %v463 = vsub.s32 0, %v462
    %v464 = vrot.slane %v459, %v463
    %v467 = vsel %vm354, %v70, 0
    %v470 = vsel %vm354, %v71, 0
    %472 = vmatprep.subr.mxu0 0.0
    %473 = vmatpush1.msra.mxu0 %v458
    %474 = vmatprep.subr.mxu0 0.0
    %475 = vmatpush1.msra.mxu0 0.0
    %476 = vmatprep.subr.mxu0 0.0
    %477 = vmatpush1.msra.mxu0 0.0
    %478 = vmatprep.subr.mxu0 0.0
    %479 = vmatpush1.msra.mxu0 0.0
    %480 = vmatprep.subr.mxu0 0.0
    %481 = vmatpush1.msra.mxu0 0.0
    %482 = vmatprep.subr.mxu0 0.0
    %483 = vmatpush1.msra.mxu0 0.0
    %484 = vmatprep.subr.mxu0 0.0
    %485 = vmatpush1.msra.mxu0 0.0
    %486 = vmatprep.subr.mxu0 0.0
    %487 = vmatpush1.msra.mxu0 0.0
    %488 = vmatprep.subr.mxu0 0.0
    %489 = vmatpush1.msra.mxu0 0.0
    %490 = vmatprep.subr.mxu0 0.0
    %491 = vmatpush1.msra.mxu0 0.0
    %492 = vmatprep.subr.mxu0 0.0
    %493 = vmatpush1.msra.mxu0 0.0
    %494 = vmatprep.subr.mxu0 0.0
    %495 = vmatpush1.msra.mxu0 0.0
    %496 = vmatprep.subr.mxu0 0.0
    %497 = vmatpush1.msra.mxu0 0.0
    %498 = vmatprep.subr.mxu0 0.0
    %499 = vmatpush1.msra.mxu0 0.0
    %500 = vmatprep.subr.mxu0 0.0
    %501 = vmatpush1.msra.mxu0 0.0
    %502 = vmatprep.subr.mxu0 0.0
    %503 = vmatpush1.msra.mxu0 0.0
    %504 = vmatprep.subr.mxu0 0.0
    %505 = vmatpush1.msra.mxu0 0.0
    %506 = vmatprep.subr.mxu0 0.0
    %507 = vmatpush1.msra.mxu0 0.0
    %508 = vmatprep.subr.mxu0 0.0
    %509 = vmatpush1.msra.mxu0 0.0
    %510 = vmatprep.subr.mxu0 0.0
    %511 = vmatpush1.msra.mxu0 0.0
    %512 = vmatprep.subr.mxu0 0.0
    %513 = vmatpush1.msra.mxu0 0.0
    %514 = vmatprep.subr.mxu0 0.0
    %515 = vmatpush1.msra.mxu0 0.0
    %516 = vmatprep.subr.mxu0 0.0
    %517 = vmatpush1.msra.mxu0 0.0
    %518 = vmatprep.subr.mxu0 0.0
    %519 = vmatpush1.msra.mxu0 0.0
    %520 = vmatprep.subr.mxu0 0.0
    %521 = vmatpush1.msra.mxu0 0.0
    %522 = vmatprep.subr.mxu0 0.0
    %523 = vmatpush1.msra.mxu0 0.0
    %524 = vmatprep.subr.mxu0 0.0
    %525 = vmatpush1.msra.mxu0 0.0
    %526 = vmatprep.subr.mxu0 0.0
    %527 = vmatpush1.msra.mxu0 0.0
    %528 = vmatprep.subr.mxu0 0.0
    %529 = vmatpush1.msra.mxu0 0.0
    %530 = vmatprep.subr.mxu0 0.0
    %531 = vmatpush1.msra.mxu0 0.0
    %532 = vmatprep.subr.mxu0 0.0
    %533 = vmatpush1.msra.mxu0 0.0
    %534 = vmatprep.subr.mxu0 0.0
    %535 = vmatpush1.msra.mxu0 0.0
    %536 = vmatprep.mubr.f32.mxu0 0.0
    %537 = vmatmul.mubr.f32.gmra.mrb[0].mxu0 %v467
    %v538 = vpop.f32.mrb[0].mxu0
    %v539 = vadd.f32 %v464, %v538
    %v540 = vpop.f32.mrb[0].mxu0
    %541 = vmatprep.mubr.f32.mxu0 0.0
    %542 = vmatmul.mubr.f32.gmra.mrb[0].mxu0 %v470
    %v543 = vpop.f32.mrb[0].mxu0
    %v544 = vadd.f32 %v464, %v543
    %v545 = vpop.f32.mrb[0].mxu0
    %546 = vdwg.mxu0
    %v547 = vadd.f32 %v456, %v539
    %v548 = vadd.f32 %v457, %v544
    %v549 = vld [vmem:[%s6] sm:$0xff]
    %v550 = vld [vmem:[%s6 + $0x8] sm:$0xff]
    %v551 = vld [vmem:[%s6 + $0x10] sm:$0xff]
    %v552 = vld [vmem:[%s6 + $0x18] sm:$0xff]
    %v553 = vld [vmem:[%s6 + $0x20] sm:$0xff]
    %v554 = vld [vmem:[%s6 + $0x28] sm:$0xff]
    %v555 = vld [vmem:[%s6 + $0x30] sm:$0xff]
    %v556 = vld [vmem:[%s6 + $0x38] sm:$0xff]
    %v557 = vld [vmem:[%s6 + $0x40] sm:$0xff]
    %v558 = vld [vmem:[%s6 + $0x48] sm:$0xff]
    %v559 = vld [vmem:[%s6 + $0x50] sm:$0xff]
    %v560 = vld [vmem:[%s6 + $0x58] sm:$0xff]
    %v561 = vld [vmem:[%s6 + $0x60] sm:$0xff]
    %v562 = vld [vmem:[%s6 + $0x68] sm:$0xff]
    %v563 = vld [vmem:[%s6 + $0x70] sm:$0xff]
    %v564 = vld [vmem:[%s6 + $0x78] sm:$0xff]
    %v565 = vld [vmem:[%s6 + $0x80] sm:$0xff]
    %v566 = vld [vmem:[%s6 + $0x88] sm:$0xff]
    %v567 = vld [vmem:[%s6 + $0x90] sm:$0xff]
    %v568 = vld [vmem:[%s6 + $0x98] sm:$0xff]
    %v569 = vld [vmem:[%s6 + $0xa0] sm:$0xff]
    %v570 = vld [vmem:[%s6 + $0xa8] sm:$0xff]
    %v571 = vld [vmem:[%s6 + $0xb0] sm:$0xff]
    %v572 = vld [vmem:[%s6 + $0xb8] sm:$0xff]
    %v573 = vld [vmem:[%s7] sm:$0x1]
    %v574 = vpack.c.bf16 %v548, %v547
    %575 = vmatprep.subr.bf16.mxu0 0
    %576 = vmatpush1.bf16.msra.mxu0 %v574
    %577 = vmatprep.subr.bf16.mxu0 0
    %578 = vmatpush1.bf16.msra.mxu0 0
    %579 = vmatprep.subr.bf16.mxu0 0
    %580 = vmatpush1.bf16.msra.mxu0 0
    %581 = vmatprep.subr.bf16.mxu0 0
    %582 = vmatpush1.bf16.msra.mxu0 0
    %583 = vmatprep.subr.bf16.mxu0 0
    %584 = vmatpush1.bf16.msra.mxu0 0
    %585 = vmatprep.subr.bf16.mxu0 0
    %586 = vmatpush1.bf16.msra.mxu0 0
    %587 = vmatprep.subr.bf16.mxu0 0
    %588 = vmatpush1.bf16.msra.mxu0 0
    %589 = vmatprep.subr.bf16.mxu0 0
    %590 = vmatpush1.bf16.msra.mxu0 0
    %591 = vmatprep.subr.bf16.mxu0 0
    %592 = vmatpush1.bf16.msra.mxu0 0
    %593 = vmatprep.subr.bf16.mxu0 0
    %594 = vmatpush1.bf16.msra.mxu0 0
    %595 = vmatprep.subr.bf16.mxu0 0
    %596 = vmatpush1.bf16.msra.mxu0 0
    %597 = vmatprep.subr.bf16.mxu0 0
    %598 = vmatpush1.bf16.msra.mxu0 0
    %599 = vmatprep.subr.bf16.mxu0 0
    %600 = vmatpush1.bf16.msra.mxu0 0
    %601 = vmatprep.subr.bf16.mxu0 0
    %602 = vmatpush1.bf16.msra.mxu0 0
    %603 = vmatprep.subr.bf16.mxu0 0
    %604 = vmatpush1.bf16.msra.mxu0 0
    %605 = vmatprep.subr.bf16.mxu0 0
    %606 = vmatpush1.bf16.msra.mxu0 0
    %607 = vmatprep.mubr.bf16.mxu0 0
    %608 = vmatmul.mubr.bf16.gmra.mrb[0].mxu0 %v87
    %v609 = vpop.f32.mrb[0].mxu0
    %v610 = vadd.f32 0.0, %v609
    %v611 = vpop.f32.mrb[0].mxu0
    %v612 = vpop.f32.mrb[0].mxu0
    %v613 = vadd.f32 0.0, %v612
    %v614 = vpop.f32.mrb[0].mxu0
    %615 = vdwg.mxu0
    %v616 = vpack.c.bf16 %v613, %v610
    %617 = vmatprep.subr.bf16.mxu0 0
    %618 = vmatpush1.bf16.msra.mxu0 %v616
    %619 = vmatprep.subr.bf16.mxu0 0
    %620 = vmatpush1.bf16.msra.mxu0 0
    %621 = vmatprep.subr.bf16.mxu0 0
    %622 = vmatpush1.bf16.msra.mxu0 0
    %623 = vmatprep.subr.bf16.mxu0 0
    %624 = vmatpush1.bf16.msra.mxu0 0
    %625 = vmatprep.subr.bf16.mxu0 0
    %626 = vmatpush1.bf16.msra.mxu0 0
    %627 = vmatprep.subr.bf16.mxu0 0
    %628 = vmatpush1.bf16.msra.mxu0 0
    %629 = vmatprep.subr.bf16.mxu0 0
    %630 = vmatpush1.bf16.msra.mxu0 0
    %631 = vmatprep.subr.bf16.mxu0 0
    %632 = vmatpush1.bf16.msra.mxu0 0
    %633 = vmatprep.subr.bf16.mxu0 0
    %634 = vmatpush1.bf16.msra.mxu0 0
    %635 = vmatprep.subr.bf16.mxu0 0
    %636 = vmatpush1.bf16.msra.mxu0 0
    %637 = vmatprep.subr.bf16.mxu0 0
    %638 = vmatpush1.bf16.msra.mxu0 0
    %639 = vmatprep.subr.bf16.mxu0 0
    %640 = vmatpush1.bf16.msra.mxu0 0
    %641 = vmatprep.subr.bf16.mxu0 0
    %642 = vmatpush1.bf16.msra.mxu0 0
    %643 = vmatprep.subr.bf16.mxu0 0
    %644 = vmatpush1.bf16.msra.mxu0 0
    %645 = vmatprep.subr.bf16.mxu0 0
    %646 = vmatpush1.bf16.msra.mxu0 0
    %647 = vmatprep.subr.bf16.mxu0 0
    %648 = vmatpush1.bf16.msra.mxu0 0
    %649 = vmatprep.mubr.bf16.mxu0 0
    %650 = vmatmul.mubr.bf16.gmra.mrb[0].mxu0 %v87
    %v651 = vpop.f32.mrb[0].mxu0
    %v652 = vadd.f32 0.0, %v651
    %v653 = vpop.f32.mrb[0].mxu0
    %v654 = vpop.f32.mrb[0].mxu0
    %v655 = vadd.f32 0.0, %v654
    %v656 = vpop.f32.mrb[0].mxu0
    %657 = vdwg.mxu0
    %v658 = vmul.f32 %v652, 2.0
    %v659 = vmul.f32 %v655, 2.0
    %v660 = vsub.f32 %v658, %v547
    %v661 = vsub.f32 %v659, %v548
    %v662 = vpack.c.bf16 %v661, %v660
    %663 = vmatprep.subr.bf16.mxu0 0
    %664 = vmatpush1.bf16.msra.mxu0 %v662
    %665 = vmatprep.subr.bf16.mxu0 0
    %666 = vmatpush1.bf16.msra.mxu0 0
    %667 = vmatprep.subr.bf16.mxu0 0
    %668 = vmatpush1.bf16.msra.mxu0 0
    %669 = vmatprep.subr.bf16.mxu0 0
    %670 = vmatpush1.bf16.msra.mxu0 0
    %671 = vmatprep.subr.bf16.mxu0 0
    %672 = vmatpush1.bf16.msra.mxu0 0
    %673 = vmatprep.subr.bf16.mxu0 0
    %674 = vmatpush1.bf16.msra.mxu0 0
    %675 = vmatprep.subr.bf16.mxu0 0
    %676 = vmatpush1.bf16.msra.mxu0 0
    %677 = vmatprep.subr.bf16.mxu0 0
    %678 = vmatpush1.bf16.msra.mxu0 0
    %679 = vmatprep.subr.bf16.mxu0 0
    %680 = vmatpush1.bf16.msra.mxu0 0
    %681 = vmatprep.subr.bf16.mxu0 0
    %682 = vmatpush1.bf16.msra.mxu0 0
    %683 = vmatprep.subr.bf16.mxu0 0
    %684 = vmatpush1.bf16.msra.mxu0 0
    %685 = vmatprep.subr.bf16.mxu0 0
    %686 = vmatpush1.bf16.msra.mxu0 0
    %687 = vmatprep.subr.bf16.mxu0 0
    %688 = vmatpush1.bf16.msra.mxu0 0
    %689 = vmatprep.subr.bf16.mxu0 0
    %690 = vmatpush1.bf16.msra.mxu0 0
    %691 = vmatprep.subr.bf16.mxu0 0
    %692 = vmatpush1.bf16.msra.mxu0 0
    %693 = vmatprep.subr.bf16.mxu0 0
    %694 = vmatpush1.bf16.msra.mxu0 0
    %695 = vmatprep.mubr.bf16.mxu0 0
    %696 = vmatmul.mubr.bf16.gmra.mrb[0].mxu0 %v87
    %v697 = vpop.f32.mrb[0].mxu0
    %v698 = vadd.f32 0.0, %v697
    %v699 = vpop.f32.mrb[0].mxu0
    %v700 = vpop.f32.mrb[0].mxu0
    %v701 = vadd.f32 0.0, %v700
    %v702 = vpop.f32.mrb[0].mxu0
    %703 = vdwg.mxu0
    %v704 = vmul.f32 %v698, 2.0
    %v705 = vmul.f32 %v701, 2.0
    %v706 = vsub.f32 %v704, %v610
    %v707 = vsub.f32 %v705, %v613
    %v708 = vpack.c.bf16 %v707, %v706
    %709 = vmatprep.subr.bf16.mxu0 0
    %710 = vmatpush1.bf16.msra.mxu0 %v708
    %711 = vmatprep.subr.bf16.mxu0 0
    %712 = vmatpush1.bf16.msra.mxu0 0
    %713 = vmatprep.subr.bf16.mxu0 0
    %714 = vmatpush1.bf16.msra.mxu0 0
    %715 = vmatprep.subr.bf16.mxu0 0
    %716 = vmatpush1.bf16.msra.mxu0 0
    %717 = vmatprep.subr.bf16.mxu0 0
    %718 = vmatpush1.bf16.msra.mxu0 0
    %719 = vmatprep.subr.bf16.mxu0 0
    %720 = vmatpush1.bf16.msra.mxu0 0
    %721 = vmatprep.subr.bf16.mxu0 0
    %722 = vmatpush1.bf16.msra.mxu0 0
    %723 = vmatprep.subr.bf16.mxu0 0
    %724 = vmatpush1.bf16.msra.mxu0 0
    %725 = vmatprep.subr.bf16.mxu0 0
    %726 = vmatpush1.bf16.msra.mxu0 0
    %727 = vmatprep.subr.bf16.mxu0 0
    %728 = vmatpush1.bf16.msra.mxu0 0
    %729 = vmatprep.subr.bf16.mxu0 0
    %730 = vmatpush1.bf16.msra.mxu0 0
    %731 = vmatprep.subr.bf16.mxu0 0
    %732 = vmatpush1.bf16.msra.mxu0 0
    %733 = vmatprep.subr.bf16.mxu0 0
    %734 = vmatpush1.bf16.msra.mxu0 0
    %735 = vmatprep.subr.bf16.mxu0 0
    %736 = vmatpush1.bf16.msra.mxu0 0
    %737 = vmatprep.subr.bf16.mxu0 0
    %738 = vmatpush1.bf16.msra.mxu0 0
    %739 = vmatprep.subr.bf16.mxu0 0
    %740 = vmatpush1.bf16.msra.mxu0 0
    %741 = vmatprep.mubr.bf16.mxu0 0
    %742 = vmatmul.mubr.bf16.gmra.mrb[0].mxu0 %v87
    %v743 = vpop.f32.mrb[0].mxu0
    %v744 = vadd.f32 0.0, %v743
    %v745 = vpop.f32.mrb[0].mxu0
    %v746 = vpop.f32.mrb[0].mxu0
    %v747 = vadd.f32 0.0, %v746
    %v748 = vpop.f32.mrb[0].mxu0
    %749 = vdwg.mxu0
    %v750 = vmul.f32 %v744, 2.0
    %v751 = vmul.f32 %v747, 2.0
    %v752 = vsub.f32 %v750, %v660
    %v753 = vsub.f32 %v751, %v661
    %v754 = vpack.c.bf16 %v753, %v752
    %755 = vmatprep.subr.bf16.mxu0 0
    %756 = vmatpush1.bf16.msra.mxu0 %v754
    %757 = vmatprep.subr.bf16.mxu0 0
    %758 = vmatpush1.bf16.msra.mxu0 0
    %759 = vmatprep.subr.bf16.mxu0 0
    %760 = vmatpush1.bf16.msra.mxu0 0
    %761 = vmatprep.subr.bf16.mxu0 0
    %762 = vmatpush1.bf16.msra.mxu0 0
    %763 = vmatprep.subr.bf16.mxu0 0
    %764 = vmatpush1.bf16.msra.mxu0 0
    %765 = vmatprep.subr.bf16.mxu0 0
    %766 = vmatpush1.bf16.msra.mxu0 0
    %767 = vmatprep.subr.bf16.mxu0 0
    %768 = vmatpush1.bf16.msra.mxu0 0
    %769 = vmatprep.subr.bf16.mxu0 0
    %770 = vmatpush1.bf16.msra.mxu0 0
    %771 = vmatprep.subr.bf16.mxu0 0
    %772 = vmatpush1.bf16.msra.mxu0 0
    %773 = vmatprep.subr.bf16.mxu0 0
    %774 = vmatpush1.bf16.msra.mxu0 0
    %775 = vmatprep.subr.bf16.mxu0 0
    %776 = vmatpush1.bf16.msra.mxu0 0
    %777 = vmatprep.subr.bf16.mxu0 0
    %778 = vmatpush1.bf16.msra.mxu0 0
    %779 = vmatprep.subr.bf16.mxu0 0
    %780 = vmatpush1.bf16.msra.mxu0 0
    %781 = vmatprep.subr.bf16.mxu0 0
    %782 = vmatpush1.bf16.msra.mxu0 0
    %783 = vmatprep.subr.bf16.mxu0 0
    %784 = vmatpush1.bf16.msra.mxu0 0
    %785 = vmatprep.subr.bf16.mxu0 0
    %786 = vmatpush1.bf16.msra.mxu0 0
    %787 = vmatprep.mubr.bf16.mxu0 0
    %788 = vmatmul.mubr.bf16.gmra.mrb[0].mxu0 %v87
    %v789 = vpop.f32.mrb[0].mxu0
    %v790 = vadd.f32 0.0, %v789
    %v791 = vpop.f32.mrb[0].mxu0
    %v792 = vpop.f32.mrb[0].mxu0
    %v793 = vadd.f32 0.0, %v792
    %v794 = vpop.f32.mrb[0].mxu0
    %795 = vdwg.mxu0
    %v796 = vmul.f32 %v790, 2.0
    %v797 = vmul.f32 %v793, 2.0
    %v798 = vsub.f32 %v796, %v706
    %v799 = vsub.f32 %v797, %v707
    %802 = vrot.lane.b32.xlu0 %v610, 32
    %v803 = vpop.permute.xlu0 %802
    %804 = vrot.lane.b32.xlu0 %v613, 32
    %v805 = vpop.permute.xlu0 %804
    %810 = vrot.lane.b32.xlu0 %v660, 64
    %v811 = vpop.permute.xlu0 %810
    %812 = vrot.lane.b32.xlu0 %v661, 64
    %v813 = vpop.permute.xlu0 %812
    %818 = vrot.lane.b32.xlu0 %v706, 96
    %v819 = vpop.permute.xlu0 %818
    %820 = vrot.lane.b32.xlu0 %v707, 96
    %v821 = vpop.permute.xlu0 %820
    %826 = vrot.lane.b32.xlu0 %v798, 32
    %v827 = vpop.permute.xlu0 %826
    %828 = vrot.lane.b32.xlu0 %v799, 32
    %v829 = vpop.permute.xlu0 %828
    %v832 = vsel %vm362, %v547, %v803
    %v833 = vsel %vm362, %v548, %v805
    %vm834 = vcmask 523264
    %v835 = vsel %vm834, %v832, %v811
    %v836 = vsel %vm834, %v833, %v813
    %vm837 = vcmask 785408
    %v838 = vsel %vm837, %v835, %v819
    %v839 = vsel %vm837, %v836, %v821
    %v840 = vsel %vm362, %v752, %v827
    %v841 = vsel %vm362, %v753, %v829
    %v843 = vlaneseq
    %v844 = vshrl.u32 %v843, 7
    %v845 = vsub.s32 0, %v844
    %v846 = vrot.slane %v573, %v845
    %v849 = vsel %vm834, %v840, 0
    %v852 = vsel %vm834, %v841, 0
    %854 = vmatprep.subr.mxu0 0.0
    %855 = vmatpush1.msra.mxu0 %v549
    %856 = vmatprep.subr.mxu0 0.0
    %857 = vmatpush1.msra.mxu0 %v550
    %858 = vmatprep.subr.mxu0 0.0
    %859 = vmatpush1.msra.mxu0 %v551
    %860 = vmatprep.subr.mxu0 0.0
    %861 = vmatpush1.msra.mxu0 %v552
    %862 = vmatprep.subr.mxu0 0.0
    %863 = vmatpush1.msra.mxu0 %v553
    %864 = vmatprep.subr.mxu0 0.0
    %865 = vmatpush1.msra.mxu0 %v554
    %866 = vmatprep.subr.mxu0 0.0
    %867 = vmatpush1.msra.mxu0 %v555
    %868 = vmatprep.subr.mxu0 0.0
    %869 = vmatpush1.msra.mxu0 %v556
    %870 = vmatprep.subr.mxu0 0.0
    %871 = vmatpush1.msra.mxu0 %v557
    %872 = vmatprep.subr.mxu0 0.0
    %873 = vmatpush1.msra.mxu0 %v558
    %874 = vmatprep.subr.mxu0 0.0
    %875 = vmatpush1.msra.mxu0 %v559
    %876 = vmatprep.subr.mxu0 0.0
    %877 = vmatpush1.msra.mxu0 %v560
    %878 = vmatprep.subr.mxu0 0.0
    %879 = vmatpush1.msra.mxu0 %v561
    %880 = vmatprep.subr.mxu0 0.0
    %881 = vmatpush1.msra.mxu0 %v562
    %882 = vmatprep.subr.mxu0 0.0
    %883 = vmatpush1.msra.mxu0 %v563
    %884 = vmatprep.subr.mxu0 0.0
    %885 = vmatpush1.msra.mxu0 %v564
    %886 = vmatprep.subr.mxu0 0.0
    %887 = vmatpush1.msra.mxu0 %v565
    %888 = vmatprep.subr.mxu0 0.0
    %889 = vmatpush1.msra.mxu0 %v566
    %890 = vmatprep.subr.mxu0 0.0
    %891 = vmatpush1.msra.mxu0 %v567
    %892 = vmatprep.subr.mxu0 0.0
    %893 = vmatpush1.msra.mxu0 %v568
    %894 = vmatprep.subr.mxu0 0.0
    %895 = vmatpush1.msra.mxu0 %v569
    %896 = vmatprep.subr.mxu0 0.0
    %897 = vmatpush1.msra.mxu0 %v570
    %898 = vmatprep.subr.mxu0 0.0
    %899 = vmatpush1.msra.mxu0 %v571
    %900 = vmatprep.subr.mxu0 0.0
    %901 = vmatpush1.msra.mxu0 %v572
    %902 = vmatprep.subr.mxu0 0.0
    %903 = vmatpush1.msra.mxu0 0.0
    %904 = vmatprep.subr.mxu0 0.0
    %905 = vmatpush1.msra.mxu0 0.0
    %906 = vmatprep.subr.mxu0 0.0
    %907 = vmatpush1.msra.mxu0 0.0
    %908 = vmatprep.subr.mxu0 0.0
    %909 = vmatpush1.msra.mxu0 0.0
    %910 = vmatprep.subr.mxu0 0.0
    %911 = vmatpush1.msra.mxu0 0.0
    %912 = vmatprep.subr.mxu0 0.0
    %913 = vmatpush1.msra.mxu0 0.0
    %914 = vmatprep.subr.mxu0 0.0
    %915 = vmatpush1.msra.mxu0 0.0
    %916 = vmatprep.subr.mxu0 0.0
    %917 = vmatpush1.msra.mxu0 0.0
    %918 = vmatprep.mubr.f32.mxu0 %v849
    %919 = vmatmul.mubr.f32.gmra.mrb[0].mxu0 %v838
    %v920 = vpop.f32.mrb[0].mxu0
    %v921 = vadd.f32 %v846, %v920
    %v922 = vpop.f32.mrb[0].mxu0
    %923 = vmatprep.mubr.f32.mxu0 %v852
    %924 = vmatmul.mubr.f32.gmra.mrb[0].mxu0 %v839
    %v925 = vpop.f32.mrb[0].mxu0
    %v926 = vadd.f32 %v846, %v925
    %v927 = vpop.f32.mrb[0].mxu0
    %928 = vdwg.mxu0
    %v929 = vmax.f32 %v921, 0.0
    %v930 = vmax.f32 %v926, 0.0
    %v931 = vld [vmem:[%s8] sm:$0xff]
    %v932 = vld [vmem:[%s8 + $0x8] sm:$0xff]
    %v933 = vld [vmem:[%s8 + $0x10] sm:$0xff]
    %v934 = vld [vmem:[%s8 + $0x18] sm:$0xff]
    %v935 = vld [vmem:[%s9] sm:$0x1]
    %v937 = vlaneseq
    %v938 = vshrl.u32 %v937, 7
    %v939 = vsub.s32 0, %v938
    %v940 = vrot.slane %v935, %v939
    %v943 = vsel %vm362, %v547, 0
    %v946 = vsel %vm362, %v548, 0
    %948 = vmatprep.subr.mxu0 0.0
    %949 = vmatpush1.msra.mxu0 %v931
    %950 = vmatprep.subr.mxu0 0.0
    %951 = vmatpush1.msra.mxu0 %v932
    %952 = vmatprep.subr.mxu0 0.0
    %953 = vmatpush1.msra.mxu0 %v933
    %954 = vmatprep.subr.mxu0 0.0
    %955 = vmatpush1.msra.mxu0 %v934
    %956 = vmatprep.subr.mxu0 0.0
    %957 = vmatpush1.msra.mxu0 0.0
    %958 = vmatprep.subr.mxu0 0.0
    %959 = vmatpush1.msra.mxu0 0.0
    %960 = vmatprep.subr.mxu0 0.0
    %961 = vmatpush1.msra.mxu0 0.0
    %962 = vmatprep.subr.mxu0 0.0
    %963 = vmatpush1.msra.mxu0 0.0
    %964 = vmatprep.subr.mxu0 0.0
    %965 = vmatpush1.msra.mxu0 0.0
    %966 = vmatprep.subr.mxu0 0.0
    %967 = vmatpush1.msra.mxu0 0.0
    %968 = vmatprep.subr.mxu0 0.0
    %969 = vmatpush1.msra.mxu0 0.0
    %970 = vmatprep.subr.mxu0 0.0
    %971 = vmatpush1.msra.mxu0 0.0
    %972 = vmatprep.subr.mxu0 0.0
    %973 = vmatpush1.msra.mxu0 0.0
    %974 = vmatprep.subr.mxu0 0.0
    %975 = vmatpush1.msra.mxu0 0.0
    %976 = vmatprep.subr.mxu0 0.0
    %977 = vmatpush1.msra.mxu0 0.0
    %978 = vmatprep.subr.mxu0 0.0
    %979 = vmatpush1.msra.mxu0 0.0
    %980 = vmatprep.subr.mxu0 0.0
    %981 = vmatpush1.msra.mxu0 0.0
    %982 = vmatprep.subr.mxu0 0.0
    %983 = vmatpush1.msra.mxu0 0.0
    %984 = vmatprep.subr.mxu0 0.0
    %985 = vmatpush1.msra.mxu0 0.0
    %986 = vmatprep.subr.mxu0 0.0
    %987 = vmatpush1.msra.mxu0 0.0
    %988 = vmatprep.subr.mxu0 0.0
    %989 = vmatpush1.msra.mxu0 0.0
    %990 = vmatprep.subr.mxu0 0.0
    %991 = vmatpush1.msra.mxu0 0.0
    %992 = vmatprep.subr.mxu0 0.0
    %993 = vmatpush1.msra.mxu0 0.0
    %994 = vmatprep.subr.mxu0 0.0
    %995 = vmatpush1.msra.mxu0 0.0
    %996 = vmatprep.subr.mxu0 0.0
    %997 = vmatpush1.msra.mxu0 0.0
    %998 = vmatprep.subr.mxu0 0.0
    %999 = vmatpush1.msra.mxu0 0.0
    %1000 = vmatprep.subr.mxu0 0.0
    %1001 = vmatpush1.msra.mxu0 0.0
    %1002 = vmatprep.subr.mxu0 0.0
    %1003 = vmatpush1.msra.mxu0 0.0
    %1004 = vmatprep.subr.mxu0 0.0
    %1005 = vmatpush1.msra.mxu0 0.0
    %1006 = vmatprep.subr.mxu0 0.0
    %1007 = vmatpush1.msra.mxu0 0.0
    %1008 = vmatprep.subr.mxu0 0.0
    %1009 = vmatpush1.msra.mxu0 0.0
    %1010 = vmatprep.subr.mxu0 0.0
    %1011 = vmatpush1.msra.mxu0 0.0
    %1012 = vmatprep.mubr.f32.mxu0 0.0
    %1013 = vmatmul.mubr.f32.gmra.mrb[0].mxu0 %v943
    %v1014 = vpop.f32.mrb[0].mxu0
    %v1015 = vadd.f32 %v940, %v1014
    %v1016 = vpop.f32.mrb[0].mxu0
    %1017 = vmatprep.mubr.f32.mxu0 0.0
    %1018 = vmatmul.mubr.f32.gmra.mrb[0].mxu0 %v946
    %v1019 = vpop.f32.mrb[0].mxu0
    %v1020 = vadd.f32 %v940, %v1019
    %v1021 = vpop.f32.mrb[0].mxu0
    %1022 = vdwg.mxu0
    %v1023 = vadd.f32 %v929, %v1015
    %v1024 = vadd.f32 %v930, %v1020
    %v1025 = vld [vmem:[#allocation2] sm:$0xff]
    %v1026 = vld [vmem:[#allocation2 + $0x8] sm:$0xff]
    %v1027 = vld [vmem:[#allocation2 + $0x10] sm:$0xff]
    %v1028 = vld [vmem:[#allocation2 + $0x18] sm:$0xff]
    %v1029 = vld [vmem:[#allocation2 + $0x20] sm:$0xff]
    %v1030 = vld [vmem:[#allocation2 + $0x28] sm:$0xff]
    %v1031 = vld [vmem:[#allocation2 + $0x30] sm:$0xff]
    %v1032 = vld [vmem:[#allocation2 + $0x38] sm:$0xff]
    %v1033 = vld [vmem:[#allocation2 + $0x40] sm:$0xff]
    %v1034 = vld [vmem:[#allocation2 + $0x48] sm:$0xff]
    %v1035 = vld [vmem:[#allocation2 + $0x50] sm:$0xff]
    %v1036 = vld [vmem:[#allocation2 + $0x58] sm:$0xff]
    %v1037 = vld [vmem:[#allocation2 + $0x60] sm:$0xff]
    %v1038 = vld [vmem:[#allocation2 + $0x68] sm:$0xff]
    %v1039 = vld [vmem:[#allocation2 + $0x70] sm:$0xff]
    %v1040 = vld [vmem:[#allocation2 + $0x78] sm:$0xff]
    %v1041 = vld [vmem:[#allocation2 + $0x80] sm:$0xff]
    %v1042 = vld [vmem:[#allocation2 + $0x88] sm:$0xff]
    %v1043 = vld [vmem:[#allocation2 + $0x90] sm:$0xff]
    %v1044 = vld [vmem:[#allocation2 + $0x98] sm:$0xff]
    %v1045 = vld [vmem:[#allocation2 + $0xa0] sm:$0xff]
    %v1046 = vld [vmem:[#allocation2 + $0xa8] sm:$0xff]
    %v1047 = vld [vmem:[#allocation2 + $0xb0] sm:$0xff]
    %v1048 = vld [vmem:[#allocation2 + $0xb8] sm:$0xff]
    %v1049 = vld [vmem:[%s11] sm:$0x1]
    %v1050 = vpack.c.bf16 %v1024, %v1023
    %1051 = vmatprep.subr.bf16.mxu0 0
    %1052 = vmatpush1.bf16.msra.mxu0 %v1050
    %1053 = vmatprep.subr.bf16.mxu0 0
    %1054 = vmatpush1.bf16.msra.mxu0 0
    %1055 = vmatprep.subr.bf16.mxu0 0
    %1056 = vmatpush1.bf16.msra.mxu0 0
    %1057 = vmatprep.subr.bf16.mxu0 0
    %1058 = vmatpush1.bf16.msra.mxu0 0
    %1059 = vmatprep.subr.bf16.mxu0 0
    %1060 = vmatpush1.bf16.msra.mxu0 0
    %1061 = vmatprep.subr.bf16.mxu0 0
    %1062 = vmatpush1.bf16.msra.mxu0 0
    %1063 = vmatprep.subr.bf16.mxu0 0
    %1064 = vmatpush1.bf16.msra.mxu0 0
    %1065 = vmatprep.subr.bf16.mxu0 0
    %1066 = vmatpush1.bf16.msra.mxu0 0
    %1067 = vmatprep.subr.bf16.mxu0 0
    %1068 = vmatpush1.bf16.msra.mxu0 0
    %1069 = vmatprep.subr.bf16.mxu0 0
    %1070 = vmatpush1.bf16.msra.mxu0 0
    %1071 = vmatprep.subr.bf16.mxu0 0
    %1072 = vmatpush1.bf16.msra.mxu0 0
    %1073 = vmatprep.subr.bf16.mxu0 0
    %1074 = vmatpush1.bf16.msra.mxu0 0
    %1075 = vmatprep.subr.bf16.mxu0 0
    %1076 = vmatpush1.bf16.msra.mxu0 0
    %1077 = vmatprep.subr.bf16.mxu0 0
    %1078 = vmatpush1.bf16.msra.mxu0 0
    %1079 = vmatprep.subr.bf16.mxu0 0
    %1080 = vmatpush1.bf16.msra.mxu0 0
    %1081 = vmatprep.subr.bf16.mxu0 0
    %1082 = vmatpush1.bf16.msra.mxu0 0
    %1083 = vmatprep.mubr.bf16.mxu0 0
    %1084 = vmatmul.mubr.bf16.gmra.mrb[0].mxu0 %v87
    %v1085 = vpop.f32.mrb[0].mxu0
    %v1086 = vadd.f32 0.0, %v1085
    %v1087 = vpop.f32.mrb[0].mxu0
    %v1088 = vpop.f32.mrb[0].mxu0
    %v1089 = vadd.f32 0.0, %v1088
    %v1090 = vpop.f32.mrb[0].mxu0
    %1091 = vdwg.mxu0
    %v1092 = vpack.c.bf16 %v1089, %v1086
    %1093 = vmatprep.subr.bf16.mxu0 0
    %1094 = vmatpush1.bf16.msra.mxu0 %v1092
    %1095 = vmatprep.subr.bf16.mxu0 0
    %1096 = vmatpush1.bf16.msra.mxu0 0
    %1097 = vmatprep.subr.bf16.mxu0 0
    %1098 = vmatpush1.bf16.msra.mxu0 0
    %1099 = vmatprep.subr.bf16.mxu0 0
    %1100 = vmatpush1.bf16.msra.mxu0 0
    %1101 = vmatprep.subr.bf16.mxu0 0
    %1102 = vmatpush1.bf16.msra.mxu0 0
    %1103 = vmatprep.subr.bf16.mxu0 0
    %1104 = vmatpush1.bf16.msra.mxu0 0
    %1105 = vmatprep.subr.bf16.mxu0 0
    %1106 = vmatpush1.bf16.msra.mxu0 0
    %1107 = vmatprep.subr.bf16.mxu0 0
    %1108 = vmatpush1.bf16.msra.mxu0 0
    %1109 = vmatprep.subr.bf16.mxu0 0
    %1110 = vmatpush1.bf16.msra.mxu0 0
    %1111 = vmatprep.subr.bf16.mxu0 0
    %1112 = vmatpush1.bf16.msra.mxu0 0
    %1113 = vmatprep.subr.bf16.mxu0 0
    %1114 = vmatpush1.bf16.msra.mxu0 0
    %1115 = vmatprep.subr.bf16.mxu0 0
    %1116 = vmatpush1.bf16.msra.mxu0 0
    %1117 = vmatprep.subr.bf16.mxu0 0
    %1118 = vmatpush1.bf16.msra.mxu0 0
    %1119 = vmatprep.subr.bf16.mxu0 0
    %1120 = vmatpush1.bf16.msra.mxu0 0
    %1121 = vmatprep.subr.bf16.mxu0 0
    %1122 = vmatpush1.bf16.msra.mxu0 0
    %1123 = vmatprep.subr.bf16.mxu0 0
    %1124 = vmatpush1.bf16.msra.mxu0 0
    %1125 = vmatprep.mubr.bf16.mxu0 0
    %1126 = vmatmul.mubr.bf16.gmra.mrb[0].mxu0 %v87
    %v1127 = vpop.f32.mrb[0].mxu0
    %v1128 = vadd.f32 0.0, %v1127
    %v1129 = vpop.f32.mrb[0].mxu0
    %v1130 = vpop.f32.mrb[0].mxu0
    %v1131 = vadd.f32 0.0, %v1130
    %v1132 = vpop.f32.mrb[0].mxu0
    %1133 = vdwg.mxu0
    %v1134 = vmul.f32 %v1128, 2.0
    %v1135 = vmul.f32 %v1131, 2.0
    %v1136 = vsub.f32 %v1134, %v1023
    %v1137 = vsub.f32 %v1135, %v1024
    %v1138 = vpack.c.bf16 %v1137, %v1136
    %1139 = vmatprep.subr.bf16.mxu0 0
    %1140 = vmatpush1.bf16.msra.mxu0 %v1138
    %1141 = vmatprep.subr.bf16.mxu0 0
    %1142 = vmatpush1.bf16.msra.mxu0 0
    %1143 = vmatprep.subr.bf16.mxu0 0
    %1144 = vmatpush1.bf16.msra.mxu0 0
    %1145 = vmatprep.subr.bf16.mxu0 0
    %1146 = vmatpush1.bf16.msra.mxu0 0
    %1147 = vmatprep.subr.bf16.mxu0 0
    %1148 = vmatpush1.bf16.msra.mxu0 0
    %1149 = vmatprep.subr.bf16.mxu0 0
    %1150 = vmatpush1.bf16.msra.mxu0 0
    %1151 = vmatprep.subr.bf16.mxu0 0
    %1152 = vmatpush1.bf16.msra.mxu0 0
    %1153 = vmatprep.subr.bf16.mxu0 0
    %1154 = vmatpush1.bf16.msra.mxu0 0
    %1155 = vmatprep.subr.bf16.mxu0 0
    %1156 = vmatpush1.bf16.msra.mxu0 0
    %1157 = vmatprep.subr.bf16.mxu0 0
    %1158 = vmatpush1.bf16.msra.mxu0 0
    %1159 = vmatprep.subr.bf16.mxu0 0
    %1160 = vmatpush1.bf16.msra.mxu0 0
    %1161 = vmatprep.subr.bf16.mxu0 0
    %1162 = vmatpush1.bf16.msra.mxu0 0
    %1163 = vmatprep.subr.bf16.mxu0 0
    %1164 = vmatpush1.bf16.msra.mxu0 0
    %1165 = vmatprep.subr.bf16.mxu0 0
    %1166 = vmatpush1.bf16.msra.mxu0 0
    %1167 = vmatprep.subr.bf16.mxu0 0
    %1168 = vmatpush1.bf16.msra.mxu0 0
    %1169 = vmatprep.subr.bf16.mxu0 0
    %1170 = vmatpush1.bf16.msra.mxu0 0
    %1171 = vmatprep.mubr.bf16.mxu0 0
    %1172 = vmatmul.mubr.bf16.gmra.mrb[0].mxu0 %v87
    %v1173 = vpop.f32.mrb[0].mxu0
    %v1174 = vadd.f32 0.0, %v1173
    %v1175 = vpop.f32.mrb[0].mxu0
    %v1176 = vpop.f32.mrb[0].mxu0
    %v1177 = vadd.f32 0.0, %v1176
    %v1178 = vpop.f32.mrb[0].mxu0
    %1179 = vdwg.mxu0
    %v1180 = vmul.f32 %v1174, 2.0
    %v1181 = vmul.f32 %v1177, 2.0
    %v1182 = vsub.f32 %v1180, %v1086
    %v1183 = vsub.f32 %v1181, %v1089
    %v1184 = vpack.c.bf16 %v1183, %v1182
    %1185 = vmatprep.subr.bf16.mxu0 0
    %1186 = vmatpush1.bf16.msra.mxu0 %v1184
    %1187 = vmatprep.subr.bf16.mxu0 0
    %1188 = vmatpush1.bf16.msra.mxu0 0
    %1189 = vmatprep.subr.bf16.mxu0 0
    %1190 = vmatpush1.bf16.msra.mxu0 0
    %1191 = vmatprep.subr.bf16.mxu0 0
    %1192 = vmatpush1.bf16.msra.mxu0 0
    %1193 = vmatprep.subr.bf16.mxu0 0
    %1194 = vmatpush1.bf16.msra.mxu0 0
    %1195 = vmatprep.subr.bf16.mxu0 0
    %1196 = vmatpush1.bf16.msra.mxu0 0
    %1197 = vmatprep.subr.bf16.mxu0 0
    %1198 = vmatpush1.bf16.msra.mxu0 0
    %1199 = vmatprep.subr.bf16.mxu0 0
    %1200 = vmatpush1.bf16.msra.mxu0 0
    %1201 = vmatprep.subr.bf16.mxu0 0
    %1202 = vmatpush1.bf16.msra.mxu0 0
    %1203 = vmatprep.subr.bf16.mxu0 0
    %1204 = vmatpush1.bf16.msra.mxu0 0
    %1205 = vmatprep.subr.bf16.mxu0 0
    %1206 = vmatpush1.bf16.msra.mxu0 0
    %1207 = vmatprep.subr.bf16.mxu0 0
    %1208 = vmatpush1.bf16.msra.mxu0 0
    %1209 = vmatprep.subr.bf16.mxu0 0
    %1210 = vmatpush1.bf16.msra.mxu0 0
    %1211 = vmatprep.subr.bf16.mxu0 0
    %1212 = vmatpush1.bf16.msra.mxu0 0
    %1213 = vmatprep.subr.bf16.mxu0 0
    %1214 = vmatpush1.bf16.msra.mxu0 0
    %1215 = vmatprep.subr.bf16.mxu0 0
    %1216 = vmatpush1.bf16.msra.mxu0 0
    %1217 = vmatprep.mubr.bf16.mxu0 0
    %1218 = vmatmul.mubr.bf16.gmra.mrb[0].mxu0 %v87
    %v1219 = vpop.f32.mrb[0].mxu0
    %v1220 = vadd.f32 0.0, %v1219
    %v1221 = vpop.f32.mrb[0].mxu0
    %v1222 = vpop.f32.mrb[0].mxu0
    %v1223 = vadd.f32 0.0, %v1222
    %v1224 = vpop.f32.mrb[0].mxu0
    %1225 = vdwg.mxu0
    %v1226 = vmul.f32 %v1220, 2.0
    %v1227 = vmul.f32 %v1223, 2.0
    %v1228 = vsub.f32 %v1226, %v1136
    %v1229 = vsub.f32 %v1227, %v1137
    %v1230 = vpack.c.bf16 %v1229, %v1228
    %1231 = vmatprep.subr.bf16.mxu0 0
    %1232 = vmatpush1.bf16.msra.mxu0 %v1230
    %1233 = vmatprep.subr.bf16.mxu0 0
    %1234 = vmatpush1.bf16.msra.mxu0 0
    %1235 = vmatprep.subr.bf16.mxu0 0
    %1236 = vmatpush1.bf16.msra.mxu0 0
    %1237 = vmatprep.subr.bf16.mxu0 0
    %1238 = vmatpush1.bf16.msra.mxu0 0
    %1239 = vmatprep.subr.bf16.mxu0 0
    %1240 = vmatpush1.bf16.msra.mxu0 0
    %1241 = vmatprep.subr.bf16.mxu0 0
    %1242 = vmatpush1.bf16.msra.mxu0 0
    %1243 = vmatprep.subr.bf16.mxu0 0
    %1244 = vmatpush1.bf16.msra.mxu0 0
    %1245 = vmatprep.subr.bf16.mxu0 0
    %1246 = vmatpush1.bf16.msra.mxu0 0
    %1247 = vmatprep.subr.bf16.mxu0 0
    %1248 = vmatpush1.bf16.msra.mxu0 0
    %1249 = vmatprep.subr.bf16.mxu0 0
    %1250 = vmatpush1.bf16.msra.mxu0 0
    %1251 = vmatprep.subr.bf16.mxu0 0
    %1252 = vmatpush1.bf16.msra.mxu0 0
    %1253 = vmatprep.subr.bf16.mxu0 0
    %1254 = vmatpush1.bf16.msra.mxu0 0
    %1255 = vmatprep.subr.bf16.mxu0 0
    %1256 = vmatpush1.bf16.msra.mxu0 0
    %1257 = vmatprep.subr.bf16.mxu0 0
    %1258 = vmatpush1.bf16.msra.mxu0 0
    %1259 = vmatprep.subr.bf16.mxu0 0
    %1260 = vmatpush1.bf16.msra.mxu0 0
    %1261 = vmatprep.subr.bf16.mxu0 0
    %1262 = vmatpush1.bf16.msra.mxu0 0
    %1263 = vmatprep.mubr.bf16.mxu0 0
    %1264 = vmatmul.mubr.bf16.gmra.mrb[0].mxu0 %v87
    %v1265 = vpop.f32.mrb[0].mxu0
    %v1266 = vadd.f32 0.0, %v1265
    %v1267 = vpop.f32.mrb[0].mxu0
    %v1268 = vpop.f32.mrb[0].mxu0
    %v1269 = vadd.f32 0.0, %v1268
    %v1270 = vpop.f32.mrb[0].mxu0
    %1271 = vdwg.mxu0
    %v1272 = vmul.f32 %v1266, 2.0
    %v1273 = vmul.f32 %v1269, 2.0
    %v1274 = vsub.f32 %v1272, %v1182
    %v1275 = vsub.f32 %v1273, %v1183
    %1278 = vrot.lane.b32.xlu0 %v1086, 32
    %v1279 = vpop.permute.xlu0 %1278
    %1280 = vrot.lane.b32.xlu0 %v1089, 32
    %v1281 = vpop.permute.xlu0 %1280
    %1286 = vrot.lane.b32.xlu0 %v1136, 64
    %v1287 = vpop.permute.xlu0 %1286
    %1288 = vrot.lane.b32.xlu0 %v1137, 64
    %v1289 = vpop.permute.xlu0 %1288
    %1294 = vrot.lane.b32.xlu0 %v1182, 96
    %v1295 = vpop.permute.xlu0 %1294
    %1296 = vrot.lane.b32.xlu0 %v1183, 96
    %v1297 = vpop.permute.xlu0 %1296
    %1302 = vrot.lane.b32.xlu0 %v1274, 32
    %v1303 = vpop.permute.xlu0 %1302
    %1304 = vrot.lane.b32.xlu0 %v1275, 32
    %v1305 = vpop.permute.xlu0 %1304
    %v1308 = vsel %vm362, %v1023, %v1279
    %v1309 = vsel %vm362, %v1024, %v1281
    %v1310 = vsel %vm834, %v1308, %v1287
    %v1311 = vsel %vm834, %v1309, %v1289
    %v1312 = vsel %vm837, %v1310, %v1295
    %v1313 = vsel %vm837, %v1311, %v1297
    %v1314 = vsel %vm362, %v1228, %v1303
    %v1315 = vsel %vm362, %v1229, %v1305
    %v1317 = vlaneseq
    %v1318 = vshrl.u32 %v1317, 7
    %v1319 = vsub.s32 0, %v1318
    %v1320 = vrot.slane %v1049, %v1319
    %v1323 = vsel %vm834, %v1314, 0
    %v1326 = vsel %vm834, %v1315, 0
    %1328 = vmatprep.subr.mxu0 0.0
    %1329 = vmatpush1.msra.mxu0 %v1025
    %1330 = vmatprep.subr.mxu0 0.0
    %1331 = vmatpush1.msra.mxu0 %v1026
    %1332 = vmatprep.subr.mxu0 0.0
    %1333 = vmatpush1.msra.mxu0 %v1027
    %1334 = vmatprep.subr.mxu0 0.0
    %1335 = vmatpush1.msra.mxu0 %v1028
    %1336 = vmatprep.subr.mxu0 0.0
    %1337 = vmatpush1.msra.mxu0 %v1029
    %1338 = vmatprep.subr.mxu0 0.0
    %1339 = vmatpush1.msra.mxu0 %v1030
    %1340 = vmatprep.subr.mxu0 0.0
    %1341 = vmatpush1.msra.mxu0 %v1031
    %1342 = vmatprep.subr.mxu0 0.0
    %1343 = vmatpush1.msra.mxu0 %v1032
    %1344 = vmatprep.subr.mxu0 0.0
    %1345 = vmatpush1.msra.mxu0 %v1033
    %1346 = vmatprep.subr.mxu0 0.0
    %1347 = vmatpush1.msra.mxu0 %v1034
    %1348 = vmatprep.subr.mxu0 0.0
    %1349 = vmatpush1.msra.mxu0 %v1035
    %1350 = vmatprep.subr.mxu0 0.0
    %1351 = vmatpush1.msra.mxu0 %v1036
    %1352 = vmatprep.subr.mxu0 0.0
    %1353 = vmatpush1.msra.mxu0 %v1037
    %1354 = vmatprep.subr.mxu0 0.0
    %1355 = vmatpush1.msra.mxu0 %v1038
    %1356 = vmatprep.subr.mxu0 0.0
    %1357 = vmatpush1.msra.mxu0 %v1039
    %1358 = vmatprep.subr.mxu0 0.0
    %1359 = vmatpush1.msra.mxu0 %v1040
    %1360 = vmatprep.subr.mxu0 0.0
    %1361 = vmatpush1.msra.mxu0 %v1041
    %1362 = vmatprep.subr.mxu0 0.0
    %1363 = vmatpush1.msra.mxu0 %v1042
    %1364 = vmatprep.subr.mxu0 0.0
    %1365 = vmatpush1.msra.mxu0 %v1043
    %1366 = vmatprep.subr.mxu0 0.0
    %1367 = vmatpush1.msra.mxu0 %v1044
    %1368 = vmatprep.subr.mxu0 0.0
    %1369 = vmatpush1.msra.mxu0 %v1045
    %1370 = vmatprep.subr.mxu0 0.0
    %1371 = vmatpush1.msra.mxu0 %v1046
    %1372 = vmatprep.subr.mxu0 0.0
    %1373 = vmatpush1.msra.mxu0 %v1047
    %1374 = vmatprep.subr.mxu0 0.0
    %1375 = vmatpush1.msra.mxu0 %v1048
    %1376 = vmatprep.subr.mxu0 0.0
    %1377 = vmatpush1.msra.mxu0 0.0
    %1378 = vmatprep.subr.mxu0 0.0
    %1379 = vmatpush1.msra.mxu0 0.0
    %1380 = vmatprep.subr.mxu0 0.0
    %1381 = vmatpush1.msra.mxu0 0.0
    %1382 = vmatprep.subr.mxu0 0.0
    %1383 = vmatpush1.msra.mxu0 0.0
    %1384 = vmatprep.subr.mxu0 0.0
    %1385 = vmatpush1.msra.mxu0 0.0
    %1386 = vmatprep.subr.mxu0 0.0
    %1387 = vmatpush1.msra.mxu0 0.0
    %1388 = vmatprep.subr.mxu0 0.0
    %1389 = vmatpush1.msra.mxu0 0.0
    %1390 = vmatprep.subr.mxu0 0.0
    %1391 = vmatpush1.msra.mxu0 0.0
    %1392 = vmatprep.mubr.f32.mxu0 %v1323
    %1393 = vmatmul.mubr.f32.gmra.mrb[0].mxu0 %v1312
    %v1394 = vpop.f32.mrb[0].mxu0
    %v1395 = vadd.f32 %v1320, %v1394
    %v1396 = vpop.f32.mrb[0].mxu0
    %1397 = vmatprep.mubr.f32.mxu0 %v1326
    %1398 = vmatmul.mubr.f32.gmra.mrb[0].mxu0 %v1313
    %v1399 = vpop.f32.mrb[0].mxu0
    %v1400 = vadd.f32 %v1320, %v1399
    %v1401 = vpop.f32.mrb[0].mxu0
    %1402 = vdwg.mxu0
    %v1403 = vmax.f32 %v1395, 0.0
    %v1404 = vmax.f32 %v1400, 0.0
    %v1405 = vld [vmem:[%s12] sm:$0xff]
    %v1406 = vld [vmem:[%s12 + $0x8] sm:$0xff]
    %v1407 = vld [vmem:[%s12 + $0x10] sm:$0xff]
    %v1408 = vld [vmem:[%s12 + $0x18] sm:$0xff]
    %v1409 = vld [vmem:[%s13] sm:$0x1]
    %v1411 = vlaneseq
    %v1412 = vshrl.u32 %v1411, 7
    %v1413 = vsub.s32 0, %v1412
    %v1414 = vrot.slane %v1409, %v1413
    %v1417 = vsel %vm362, %v1023, 0
    %v1420 = vsel %vm362, %v1024, 0
    %1422 = vmatprep.subr.mxu0 0.0
    %1423 = vmatpush1.msra.mxu0 %v1405
    %1424 = vmatprep.subr.mxu0 0.0
    %1425 = vmatpush1.msra.mxu0 %v1406
    %1426 = vmatprep.subr.mxu0 0.0
    %1427 = vmatpush1.msra.mxu0 %v1407
    %1428 = vmatprep.subr.mxu0 0.0
    %1429 = vmatpush1.msra.mxu0 %v1408
    %1430 = vmatprep.subr.mxu0 0.0
    %1431 = vmatpush1.msra.mxu0 0.0
    %1432 = vmatprep.subr.mxu0 0.0
    %1433 = vmatpush1.msra.mxu0 0.0
    %1434 = vmatprep.subr.mxu0 0.0
    %1435 = vmatpush1.msra.mxu0 0.0
    %1436 = vmatprep.subr.mxu0 0.0
    %1437 = vmatpush1.msra.mxu0 0.0
    %1438 = vmatprep.subr.mxu0 0.0
    %1439 = vmatpush1.msra.mxu0 0.0
    %1440 = vmatprep.subr.mxu0 0.0
    %1441 = vmatpush1.msra.mxu0 0.0
    %1442 = vmatprep.subr.mxu0 0.0
    %1443 = vmatpush1.msra.mxu0 0.0
    %1444 = vmatprep.subr.mxu0 0.0
    %1445 = vmatpush1.msra.mxu0 0.0
    %1446 = vmatprep.subr.mxu0 0.0
    %1447 = vmatpush1.msra.mxu0 0.0
    %1448 = vmatprep.subr.mxu0 0.0
    %1449 = vmatpush1.msra.mxu0 0.0
    %1450 = vmatprep.subr.mxu0 0.0
    %1451 = vmatpush1.msra.mxu0 0.0
    %1452 = vmatprep.subr.mxu0 0.0
    %1453 = vmatpush1.msra.mxu0 0.0
    %1454 = vmatprep.subr.mxu0 0.0
    %1455 = vmatpush1.msra.mxu0 0.0
    %1456 = vmatprep.subr.mxu0 0.0
    %1457 = vmatpush1.msra.mxu0 0.0
    %1458 = vmatprep.subr.mxu0 0.0
    %1459 = vmatpush1.msra.mxu0 0.0
    %1460 = vmatprep.subr.mxu0 0.0
    %1461 = vmatpush1.msra.mxu0 0.0
    %1462 = vmatprep.subr.mxu0 0.0
    %1463 = vmatpush1.msra.mxu0 0.0
    %1464 = vmatprep.subr.mxu0 0.0
    %1465 = vmatpush1.msra.mxu0 0.0
    %1466 = vmatprep.subr.mxu0 0.0
    %1467 = vmatpush1.msra.mxu0 0.0
    %1468 = vmatprep.subr.mxu0 0.0
    %1469 = vmatpush1.msra.mxu0 0.0
    %1470 = vmatprep.subr.mxu0 0.0
    %1471 = vmatpush1.msra.mxu0 0.0
    %1472 = vmatprep.subr.mxu0 0.0
    %1473 = vmatpush1.msra.mxu0 0.0
    %1474 = vmatprep.subr.mxu0 0.0
    %1475 = vmatpush1.msra.mxu0 0.0
    %1476 = vmatprep.subr.mxu0 0.0
    %1477 = vmatpush1.msra.mxu0 0.0
    %1478 = vmatprep.subr.mxu0 0.0
    %1479 = vmatpush1.msra.mxu0 0.0
    %1480 = vmatprep.subr.mxu0 0.0
    %1481 = vmatpush1.msra.mxu0 0.0
    %1482 = vmatprep.subr.mxu0 0.0
    %1483 = vmatpush1.msra.mxu0 0.0
    %1484 = vmatprep.subr.mxu0 0.0
    %1485 = vmatpush1.msra.mxu0 0.0
    %1486 = vmatprep.mubr.f32.mxu0 0.0
    %1487 = vmatmul.mubr.f32.gmra.mrb[0].mxu0 %v1417
    %v1488 = vpop.f32.mrb[0].mxu0
    %v1489 = vadd.f32 %v1414, %v1488
    %v1490 = vpop.f32.mrb[0].mxu0
    %1491 = vmatprep.mubr.f32.mxu0 0.0
    %1492 = vmatmul.mubr.f32.gmra.mrb[0].mxu0 %v1420
    %v1493 = vpop.f32.mrb[0].mxu0
    %v1494 = vadd.f32 %v1414, %v1493
    %v1495 = vpop.f32.mrb[0].mxu0
    %1496 = vdwg.mxu0
    %v1497 = vadd.f32 %v1403, %v1489
    %v1498 = vadd.f32 %v1404, %v1494
    %1499 = vrot.lane.b32.xlu0 %v70, 32
    %v1500 = vpop.permute.xlu0 %1499
    %1501 = vrot.lane.b32.xlu0 %v71, 32
    %v1502 = vpop.permute.xlu0 %1501
    %v1505 = vsel %vm362, %v1497, %v1500
    %v1506 = vsel %vm362, %v1498, %v1502
    %v1507 = vld [vmem:[%s14] sm:$0xff]
    %v1508 = vld [vmem:[%s14 + $0x8] sm:$0xff]
    %v1509 = vld [vmem:[%s14 + $0x10] sm:$0xff]
    %v1510 = vld [vmem:[%s14 + $0x18] sm:$0xff]
    %v1511 = vld [vmem:[%s14 + $0x20] sm:$0xff]
    %v1512 = vld [vmem:[%s14 + $0x28] sm:$0xff]
    %v1513 = vld [vmem:[%s14 + $0x30] sm:$0xff]
    %v1514 = vld [vmem:[%s14 + $0x38] sm:$0xff]
    %v1515 = vld [vmem:[%s14 + $0x40] sm:$0xff]
    %v1516 = vld [vmem:[%s14 + $0x48] sm:$0xff]
    %v1517 = vld [vmem:[%s15] sm:$0x1]
    %v1518 = vpack.c.bf16 %v1506, %v1505
    %1519 = vmatprep.subr.bf16.mxu0 0
    %1520 = vmatpush1.bf16.msra.mxu0 %v1518
    %1521 = vmatprep.subr.bf16.mxu0 0
    %1522 = vmatpush1.bf16.msra.mxu0 0
    %1523 = vmatprep.subr.bf16.mxu0 0
    %1524 = vmatpush1.bf16.msra.mxu0 0
    %1525 = vmatprep.subr.bf16.mxu0 0
    %1526 = vmatpush1.bf16.msra.mxu0 0
    %1527 = vmatprep.subr.bf16.mxu0 0
    %1528 = vmatpush1.bf16.msra.mxu0 0
    %1529 = vmatprep.subr.bf16.mxu0 0
    %1530 = vmatpush1.bf16.msra.mxu0 0
    %1531 = vmatprep.subr.bf16.mxu0 0
    %1532 = vmatpush1.bf16.msra.mxu0 0
    %1533 = vmatprep.subr.bf16.mxu0 0
    %1534 = vmatpush1.bf16.msra.mxu0 0
    %1535 = vmatprep.subr.bf16.mxu0 0
    %1536 = vmatpush1.bf16.msra.mxu0 0
    %1537 = vmatprep.subr.bf16.mxu0 0
    %1538 = vmatpush1.bf16.msra.mxu0 0
    %1539 = vmatprep.subr.bf16.mxu0 0
    %1540 = vmatpush1.bf16.msra.mxu0 0
    %1541 = vmatprep.subr.bf16.mxu0 0
    %1542 = vmatpush1.bf16.msra.mxu0 0
    %1543 = vmatprep.subr.bf16.mxu0 0
    %1544 = vmatpush1.bf16.msra.mxu0 0
    %1545 = vmatprep.subr.bf16.mxu0 0
    %1546 = vmatpush1.bf16.msra.mxu0 0
    %1547 = vmatprep.subr.bf16.mxu0 0
    %1548 = vmatpush1.bf16.msra.mxu0 0
    %1549 = vmatprep.subr.bf16.mxu0 0
    %1550 = vmatpush1.bf16.msra.mxu0 0
    %1551 = vmatprep.mubr.bf16.mxu0 0
    %1552 = vmatmul.mubr.bf16.gmra.mrb[0].mxu0 %v87
    %v1553 = vpop.f32.mrb[0].mxu0
    %v1554 = vadd.f32 0.0, %v1553
    %v1555 = vpop.f32.mrb[0].mxu0
    %v1556 = vpop.f32.mrb[0].mxu0
    %v1557 = vadd.f32 0.0, %v1556
    %v1558 = vpop.f32.mrb[0].mxu0
    %1559 = vdwg.mxu0
    %1562 = vrot.lane.b32.xlu0 %v1554, 40
    %v1563 = vpop.permute.xlu0 %1562
    %1564 = vrot.lane.b32.xlu0 %v1557, 40
    %v1565 = vpop.permute.xlu0 %1564
    %v1568 = vsel %vm365, %v1505, %v1563
    %v1569 = vsel %vm365, %v1506, %v1565
    %v1571 = vlaneseq
    %v1572 = vshrl.u32 %v1571, 7
    %v1573 = vsub.s32 0, %v1572
    %v1574 = vrot.slane %v1517, %v1573
    %vm1576 = vcmask 654336
    %v1578 = vsel %vm1576, %v1568, 0
    %v1581 = vsel %vm1576, %v1569, 0
    %1583 = vmatprep.subr.mxu0 0.0
    %1584 = vmatpush1.msra.mxu0 %v1507
    %1585 = vmatprep.subr.mxu0 0.0
    %1586 = vmatpush1.msra.mxu0 %v1508
    %1587 = vmatprep.subr.mxu0 0.0
    %1588 = vmatpush1.msra.mxu0 %v1509
    %1589 = vmatprep.subr.mxu0 0.0
    %1590 = vmatpush1.msra.mxu0 %v1510
    %1591 = vmatprep.subr.mxu0 0.0
    %1592 = vmatpush1.msra.mxu0 %v1511
    %1593 = vmatprep.subr.mxu0 0.0
    %1594 = vmatpush1.msra.mxu0 %v1512
    %1595 = vmatprep.subr.mxu0 0.0
    %1596 = vmatpush1.msra.mxu0 %v1513
    %1597 = vmatprep.subr.mxu0 0.0
    %1598 = vmatpush1.msra.mxu0 %v1514
    %1599 = vmatprep.subr.mxu0 0.0
    %1600 = vmatpush1.msra.mxu0 %v1515
    %1601 = vmatprep.subr.mxu0 0.0
    %1602 = vmatpush1.msra.mxu0 %v1516
    %1603 = vmatprep.subr.mxu0 0.0
    %1604 = vmatpush1.msra.mxu0 0.0
    %1605 = vmatprep.subr.mxu0 0.0
    %1606 = vmatpush1.msra.mxu0 0.0
    %1607 = vmatprep.subr.mxu0 0.0
    %1608 = vmatpush1.msra.mxu0 0.0
    %1609 = vmatprep.subr.mxu0 0.0
    %1610 = vmatpush1.msra.mxu0 0.0
    %1611 = vmatprep.subr.mxu0 0.0
    %1612 = vmatpush1.msra.mxu0 0.0
    %1613 = vmatprep.subr.mxu0 0.0
    %1614 = vmatpush1.msra.mxu0 0.0
    %1615 = vmatprep.subr.mxu0 0.0
    %1616 = vmatpush1.msra.mxu0 0.0
    %1617 = vmatprep.subr.mxu0 0.0
    %1618 = vmatpush1.msra.mxu0 0.0
    %1619 = vmatprep.subr.mxu0 0.0
    %1620 = vmatpush1.msra.mxu0 0.0
    %1621 = vmatprep.subr.mxu0 0.0
    %1622 = vmatpush1.msra.mxu0 0.0
    %1623 = vmatprep.subr.mxu0 0.0
    %1624 = vmatpush1.msra.mxu0 0.0
    %1625 = vmatprep.subr.mxu0 0.0
    %1626 = vmatpush1.msra.mxu0 0.0
    %1627 = vmatprep.subr.mxu0 0.0
    %1628 = vmatpush1.msra.mxu0 0.0
    %1629 = vmatprep.subr.mxu0 0.0
    %1630 = vmatpush1.msra.mxu0 0.0
    %1631 = vmatprep.subr.mxu0 0.0
    %1632 = vmatpush1.msra.mxu0 0.0
    %1633 = vmatprep.subr.mxu0 0.0
    %1634 = vmatpush1.msra.mxu0 0.0
    %1635 = vmatprep.subr.mxu0 0.0
    %1636 = vmatpush1.msra.mxu0 0.0
    %1637 = vmatprep.subr.mxu0 0.0
    %1638 = vmatpush1.msra.mxu0 0.0
    %1639 = vmatprep.subr.mxu0 0.0
    %1640 = vmatpush1.msra.mxu0 0.0
    %1641 = vmatprep.subr.mxu0 0.0
    %1642 = vmatpush1.msra.mxu0 0.0
    %1643 = vmatprep.subr.mxu0 0.0
    %1644 = vmatpush1.msra.mxu0 0.0
    %1645 = vmatprep.subr.mxu0 0.0
    %1646 = vmatpush1.msra.mxu0 0.0
    %1647 = vmatprep.mubr.f32.mxu0 0.0
    %1648 = vmatmul.mubr.f32.gmra.mrb[0].mxu0 %v1578
    %v1649 = vpop.f32.mrb[0].mxu0
    %v1650 = vadd.f32 %v1574, %v1649
    %v1651 = vpop.f32.mrb[0].mxu0
    %1652 = vmatprep.mubr.f32.mxu0 0.0
    %1653 = vmatmul.mubr.f32.gmra.mrb[0].mxu0 %v1581
    %v1654 = vpop.f32.mrb[0].mxu0
    %v1655 = vadd.f32 %v1574, %v1654
    %v1656 = vpop.f32.mrb[0].mxu0
    %1657 = vdwg.mxu0
    %1658 = vst [vmem:[%s16] sm:$0xff] %v1650
    %1659 = vst [vmem:[%s16 + $0x8] sm:$0xff] %v1655
    // Predicated region
    $region70: #{graph_resnet_forward.1} parent=1 // pred_check
      _
    $region71: #{graph_resnet_forward.1} parent=1 // pred_check_branch
      %1661 = sbr.rel (0) target = $region73
    $region72: #{graph_resnet_forward.1} parent=1 // pred_region
      _
    $region73: #{graph_resnet_forward.1} parent=1 // pred_fallthru
      _
    // Predicated region
    $region74: #{graph_resnet_forward.1} parent=1 // pred_check
      _
    $region75: #{graph_resnet_forward.1} parent=1 // pred_check_branch
      %1663 = sbr.rel (0) target = $region77
    $region76: #{graph_resnet_forward.1} parent=1 // pred_region
      _
    $region77: #{graph_resnet_forward.1} parent=1 // pred_fallthru
      _
    %1664 = vsyncpa [#allocation3], 1

</llo_original>
